<compile_context>
chip_gen: v5e
topology: v5e:2x2
jax: 0.10.0
libtpu: 0.0.40
codegen_flags: <defaults>
</compile_context>

<pallas_src>
import jax
import jax.numpy as jnp
import numpy as np
from jax.experimental import pallas as pl
from jax.experimental.pallas import tpu as pltpu

TAU = 0.2            # Sample_Categorical(0.2)
INV_TAU = 1.0 / TAU


# ----------------------------------------------------------------------------
# Pallas kernel: single invocation (grid=()), static unroll over T.
# LSTMCell + MLP + gumbel-softmax sample per step; h/c/x are loop carries.
# ----------------------------------------------------------------------------
def oracle_kernel(hx_ref, cx_ref, zb1_ref, gn_ref,      # state init / hoisted z / noise
                  ew_ref, whh_ref, bg_ref,              # fused LSTM weights (V,4H),(H,4H),(B,4H)
                  w1h_ref, w1c_ref,                      # MLP linear 0 (split over concat)
                  w2_ref, b2_ref, w3_ref, b3_ref,        # MLP linear 1, 2
                  out_ref):                              # (T, Bp, V) resident output
    T = gn_ref.shape[0]
    H = hx_ref.shape[-1]

    # Load everything once; all arrays are tiny and stay resident.
    h = hx_ref[...]
    c = cx_ref[...]
    zb1 = zb1_ref[...]
    ew = ew_ref[...]
    whh = whh_ref[...]
    bg = bg_ref[...]
    w1h = w1h_ref[...]
    w1c = w1c_ref[...]
    w2 = w2_ref[...]
    b2 = b2_ref[...]
    w3 = w3_ref[...]
    b3 = b3_ref[...]

    x = None
    for t in range(T):                       # static unroll (T is small)
        if t > 0:
            # LSTMCell with the embedding folded into the input->gate weights:
            #   gates = (x @ emb) @ Wih + h @ Whh + b == x @ (emb @ Wih) + h @ Whh + b
            # One packed (Bp, 4H=128) result; gates are lane slices of it.
            gates = (jnp.dot(x, ew, preferred_element_type=jnp.float32)
                     + jnp.dot(h, whh, preferred_element_type=jnp.float32)
                     + bg)
            i_g = jax.nn.sigmoid(gates[:, 0 * H:1 * H])
            f_g = jax.nn.sigmoid(gates[:, 1 * H:2 * H])
            g_g = jnp.tanh(gates[:, 2 * H:3 * H])
            o_g = jax.nn.sigmoid(gates[:, 3 * H:4 * H])
            c = f_g * c + i_g * g_g
            h = o_g * jnp.tanh(c)

        # Linear(2H+2, H) on concat(h, c, z) == h@W1h + c@W1c + (z@W1z + b1),
        # with the z-term hoisted into the wrapper (zb1).
        a1 = jnp.maximum(
            jnp.dot(h, w1h, preferred_element_type=jnp.float32)
            + jnp.dot(c, w1c, preferred_element_type=jnp.float32)
            + zb1, 0.0)
        a2 = jnp.maximum(
            jnp.dot(a1, w2, preferred_element_type=jnp.float32) + b2, 0.0)
        l3 = jnp.dot(a2, w3, preferred_element_type=jnp.float32) + b3   # (Bp, V)

        # Sample_Categorical(tau): gumbel_softmax(log_softmax(l3), hard=False, tau)
        #   == softmax((l3 + g) / tau)   (row-constant logsumexp shift dropped;
        #                                 max-subtract kept for stability).
        y = (l3 + gn_ref[t]) * INV_TAU
        ey = jnp.exp(y - jnp.max(y, axis=-1, keepdims=True))
        # Exact division on the recurrent path (x feeds the next step's gates).
        x = ey / jnp.sum(ey, axis=-1, keepdims=True)

        out_ref[t] = x


# ----------------------------------------------------------------------------
# Wrapper
# ----------------------------------------------------------------------------
def oracle_forward(hx, cx, z, gnoise, params):
    """hx, cx: (B, H); z: (B, 2); gnoise: (T, B, V) gumbel noise.
    Returns (B, T, V) soft samples (mode='train')."""
    B, H = hx.shape
    T, _, V = gnoise.shape
    Bp = ((B + 7) // 8) * 8                     # pad batch to a full sublane tile

    pad_b = lambda a: jnp.pad(a, ((0, Bp - B),) + ((0, 0),) * (a.ndim - 1))
    hx_p, cx_p = pad_b(hx), pad_b(cx)
    gn_p = jnp.pad(gnoise, ((0, 0), (0, Bp - B), (0, 0)))

    bc = lambda v, n: jnp.broadcast_to(jnp.reshape(v, (1, n)), (Bp, n))

    # Time-invariant z term hoisted out of the per-step loop (review #1).
    zb1 = pad_b(z) @ params["w1z"] + params["b1"]          # (Bp, H)

    # Fused LSTM weights: fold embedding into input->gate weights (review #2).
    ew = params["emb"] @ params["wih_t"]                    # (V, 4H)
    whh = params["whh_t"]                                   # (H, 4H)
    bg = bc(params["b_lstm"], 4 * H)                        # (Bp, 4H)
    b2 = bc(params["b2"], H)
    b3 = bc(params["b3"], V)

    # Everything (weights, noise, output) fits VMEM by orders of magnitude at
    # these sizes; no grid, no pipelining, single HBM writeback of the output.
    out = pl.pallas_call(
        oracle_kernel,
        out_shape=jax.ShapeDtypeStruct((T, Bp, V), jnp.float32),
        compiler_params=pltpu.CompilerParams(
            vmem_limit_bytes=4 * 1024 * 1024),
    )(hx_p, cx_p, zb1, gn_p, ew, whh, bg,
      params["w1h"], params["w1c"],
      params["w2_t"], b2, params["w3_t"], b3)

    # torch.stack(X, dim=1) -> (B, T, V); slice off batch padding.
    # (6 KiB transpose in the wrapper — negligible with the single writeback.)
    return jnp.transpose(out[:, :B, :], (1, 0, 2))


# ----------------------------------------------------------------------------
# Pure-JAX reference (same math, keeps the redundant log_softmax, explicit
# e = x @ emb, and exact division)
# ----------------------------------------------------------------------------
def oracle_reference(hx, cx, z, gnoise, params):
    T = gnoise.shape[0]
    H = hx.shape[1]
    h, c = hx, cx
    e = None
    xs = []
    for t in range(T):
        if t > 0:
            gates = e @ params["wih_t"] + h @ params["whh_t"] + params["b_lstm"]
            i_g = jax.nn.sigmoid(gates[:, 0 * H:1 * H])
            f_g = jax.nn.sigmoid(gates[:, 1 * H:2 * H])
            g_g = jnp.tanh(gates[:, 2 * H:3 * H])
            o_g = jax.nn.sigmoid(gates[:, 3 * H:4 * H])
            c = f_g * c + i_g * g_g
            h = o_g * jnp.tanh(c)
        a1 = jax.nn.relu(h @ params["w1h"] + c @ params["w1c"]
                         + z @ params["w1z"] + params["b1"])
        a2 = jax.nn.relu(a1 @ params["w2_t"] + params["b2"])
        l3 = a2 @ params["w3_t"] + params["b3"]
        logp = jax.nn.log_softmax(l3, axis=-1)
        x = jax.nn.softmax((logp + gnoise[t]) / TAU, axis=-1)
        e = x @ params["emb"]
        xs.append(x)
    return jnp.stack(xs, axis=1)


# ----------------------------------------------------------------------------
# Deterministic parameter construction (mirrors Oracle._initialize)
# ----------------------------------------------------------------------------
def make_params(key, hidden_size, vocab_size, embed_size):
    H, V, E = hidden_size, vocab_size, embed_size
    D = 2 * H + 2
    ks = jax.random.split(key, 12)
    u = lambda k, shape, a: jax.random.uniform(k, shape, jnp.float32, -a, a)

    # LSTMCell params: uniform(-1, 1)
    w_ih = u(ks[0], (4 * H, E), 1.0)
    w_hh = u(ks[1], (4 * H, H), 1.0)
    b_ih = u(ks[2], (4 * H,), 1.0)
    b_hh = u(ks[3], (4 * H,), 1.0)
    # MLP layer[0] Linear(D, H): uniform(-5, 5)
    w1 = u(ks[4], (H, D), 5.0)
    b1 = u(ks[5], (H,), 5.0)
    # MLP layer[2] Linear(H, H), layer[4] Linear(H, V): uniform(-1, 1)
    w2 = u(ks[6], (H, H), 1.0)
    b2 = u(ks[7], (H,), 1.0)
    w3 = u(ks[8], (V, H), 1.0)
    b3 = u(ks[9], (V,), 1.0)
    # nn.Embedding(V, E, padding_idx=0): normal init, row 0 zeroed
    emb = jax.random.normal(ks[10], (V, E), jnp.float32)
    emb = emb.at[0].set(0.0)

    w1_t = w1.T  # (D, H)
    return {
        "wih_t": w_ih.T,                       # (E, 4H)
        "whh_t": w_hh.T,                       # (H, 4H)
        "b_lstm": (b_ih + b_hh)[None, :],      # (1, 4H)
        "w1h": w1_t[:H, :],                    # (H, H)
        "w1c": w1_t[H:2 * H, :],               # (H, H)
        "w1z": w1_t[2 * H:, :],                # (2, H)
        "b1": b1[None, :],                     # (1, H)
        "w2_t": w2.T, "b2": b2[None, :],
        "w3_t": w3.T, "b3": b3[None, :],
        "emb": emb,                            # (V, E)
    }


if __name__ == "__main__":
    B, H, V, E, T = 4, 32, 16, 8, 6

    key = jax.random.PRNGKey(0)
    k_param, k_h, k_c, k_z, k_g = jax.random.split(key, 5)

    params = make_params(k_param, H, V, E)
    hx = jax.random.normal(k_h, (B, H), jnp.float32)
    cx = jax.random.normal(k_c, (B, H), jnp.float32)
    z = jax.random.normal(k_z, (B, 2), jnp.float32)       # torch.randn((B, 2))
    # Gumbel(0,1) noise for all T steps (torch uses -log(Exp(1)) per call)
    gnoise = -jnp.log(jax.random.exponential(k_g, (T, B, V), jnp.float32))

    out = jax.block_until_ready(
        jax.jit(oracle_forward)(hx, cx, z, gnoise, params))
    assert out.shape == (B, T, V)

    ref = oracle_reference(hx, cx, z, gnoise, params)
    # Softmax normalization is now an exact division; remaining differences are
    # f32 reassociation from the hoisted z-term / folded embedding matmul.
    np.testing.assert_allclose(np.asarray(out), np.asarray(ref),
                               rtol=1e-3, atol=1e-3)
    print("KERNEL_OK")
</pallas_src>

<mosaic_0001>
module attributes {stable_mosaic.version = 11 : i64} {
  func.func @oracle_kernel(%arg0: memref<8x32xf32, #tpu.memory_space<vmem>>, %arg1: memref<8x32xf32, #tpu.memory_space<vmem>>, %arg2: memref<8x32xf32, #tpu.memory_space<vmem>>, %arg3: memref<6x8x16xf32, #tpu.memory_space<vmem>>, %arg4: memref<16x128xf32, #tpu.memory_space<vmem>>, %arg5: memref<32x128xf32, #tpu.memory_space<vmem>>, %arg6: memref<8x128xf32, #tpu.memory_space<vmem>>, %arg7: memref<32x32xf32, #tpu.memory_space<vmem>>, %arg8: memref<32x32xf32, #tpu.memory_space<vmem>>, %arg9: memref<32x32xf32, #tpu.memory_space<vmem>>, %arg10: memref<8x32xf32, #tpu.memory_space<vmem>>, %arg11: memref<32x16xf32, #tpu.memory_space<vmem>>, %arg12: memref<8x16xf32, #tpu.memory_space<vmem>>, %arg13: memref<6x8x16xf32, #tpu.memory_space<vmem>>) attributes {dimension_semantics = [], scalar_prefetch = 0 : i64, scratch_operands = 0 : i64, tpu.core_type = #tpu.core_type<tc>} {
    %c0 = arith.constant 0 : index
    %c0_0 = arith.constant 0 : index
    %0 = vector.load %arg0[%c0, %c0_0] : memref<8x32xf32, #tpu.memory_space<vmem>>, vector<8x32xf32>
    %c0_1 = arith.constant 0 : index
    %c0_2 = arith.constant 0 : index
    %1 = vector.load %arg1[%c0_1, %c0_2] : memref<8x32xf32, #tpu.memory_space<vmem>>, vector<8x32xf32>
    %c0_3 = arith.constant 0 : index
    %c0_4 = arith.constant 0 : index
    %2 = vector.load %arg2[%c0_3, %c0_4] : memref<8x32xf32, #tpu.memory_space<vmem>>, vector<8x32xf32>
    %c0_5 = arith.constant 0 : index
    %c0_6 = arith.constant 0 : index
    %3 = vector.load %arg4[%c0_5, %c0_6] : memref<16x128xf32, #tpu.memory_space<vmem>>, vector<16x128xf32>
    %c0_7 = arith.constant 0 : index
    %c0_8 = arith.constant 0 : index
    %4 = vector.load %arg5[%c0_7, %c0_8] : memref<32x128xf32, #tpu.memory_space<vmem>>, vector<32x128xf32>
    %c0_9 = arith.constant 0 : index
    %c0_10 = arith.constant 0 : index
    %5 = vector.load %arg6[%c0_9, %c0_10] : memref<8x128xf32, #tpu.memory_space<vmem>>, vector<8x128xf32>
    %c0_11 = arith.constant 0 : index
    %c0_12 = arith.constant 0 : index
    %6 = vector.load %arg7[%c0_11, %c0_12] : memref<32x32xf32, #tpu.memory_space<vmem>>, vector<32x32xf32>
    %c0_13 = arith.constant 0 : index
    %c0_14 = arith.constant 0 : index
    %7 = vector.load %arg8[%c0_13, %c0_14] : memref<32x32xf32, #tpu.memory_space<vmem>>, vector<32x32xf32>
    %c0_15 = arith.constant 0 : index
    %c0_16 = arith.constant 0 : index
    %8 = vector.load %arg9[%c0_15, %c0_16] : memref<32x32xf32, #tpu.memory_space<vmem>>, vector<32x32xf32>
    %c0_17 = arith.constant 0 : index
    %c0_18 = arith.constant 0 : index
    %9 = vector.load %arg10[%c0_17, %c0_18] : memref<8x32xf32, #tpu.memory_space<vmem>>, vector<8x32xf32>
    %c0_19 = arith.constant 0 : index
    %c0_20 = arith.constant 0 : index
    %10 = vector.load %arg11[%c0_19, %c0_20] : memref<32x16xf32, #tpu.memory_space<vmem>>, vector<32x16xf32>
    %c0_21 = arith.constant 0 : index
    %c0_22 = arith.constant 0 : index
    %11 = vector.load %arg12[%c0_21, %c0_22] : memref<8x16xf32, #tpu.memory_space<vmem>>, vector<8x16xf32>
    %cst = arith.constant dense<0.000000e+00> : vector<8x32xf32>
    %12 = tpu.matmul %0, %6, %cst {dimension_numbers = #tpu.dot_dimension_numbers<[1], [0], [0], [1], [0, 0, 1, 1], [], []>} : vector<8x32xf32>, vector<32x32xf32>, vector<8x32xf32> -> vector<8x32xf32>
    %cst_23 = arith.constant dense<0.000000e+00> : vector<8x32xf32>
    %13 = tpu.matmul %1, %7, %cst_23 {dimension_numbers = #tpu.dot_dimension_numbers<[1], [0], [0], [1], [0, 0, 1, 1], [], []>} : vector<8x32xf32>, vector<32x32xf32>, vector<8x32xf32> -> vector<8x32xf32>
    %14 = arith.addf %12, %13 : vector<8x32xf32>
    %15 = arith.addf %14, %2 : vector<8x32xf32>
    %cst_24 = arith.constant 0.000000e+00 : f32
    %16 = vector.broadcast %cst_24 : f32 to vector<8x32xf32>
    %17 = arith.maximumf %15, %16 : vector<8x32xf32>
    %cst_25 = arith.constant dense<0.000000e+00> : vector<8x32xf32>
    %18 = tpu.matmul %17, %8, %cst_25 {dimension_numbers = #tpu.dot_dimension_numbers<[1], [0], [0], [1], [0, 0, 1, 1], [], []>} : vector<8x32xf32>, vector<32x32xf32>, vector<8x32xf32> -> vector<8x32xf32>
    %19 = arith.addf %18, %9 : vector<8x32xf32>
    %cst_26 = arith.constant 0.000000e+00 : f32
    %20 = vector.broadcast %cst_26 : f32 to vector<8x32xf32>
    %21 = arith.maximumf %19, %20 : vector<8x32xf32>
    %cst_27 = arith.constant dense<0.000000e+00> : vector<8x16xf32>
    %22 = tpu.matmul %21, %10, %cst_27 {dimension_numbers = #tpu.dot_dimension_numbers<[1], [0], [0], [1], [0, 0, 1, 1], [], []>} : vector<8x32xf32>, vector<32x16xf32>, vector<8x16xf32> -> vector<8x16xf32>
    %23 = arith.addf %22, %11 : vector<8x16xf32>
    %c0_28 = arith.constant 0 : index
    %c0_29 = arith.constant 0 : index
    %c0_30 = arith.constant 0 : index
    %24 = vector.load %arg3[%c0_28, %c0_29, %c0_30] : memref<6x8x16xf32, #tpu.memory_space<vmem>>, vector<1x8x16xf32>
    %25 = vector.shape_cast %24 : vector<1x8x16xf32> to vector<8x16xf32>
    %26 = arith.addf %23, %25 : vector<8x16xf32>
    %cst_31 = arith.constant 5.000000e+00 : f32
    %27 = vector.broadcast %cst_31 : f32 to vector<8x16xf32>
    %28 = arith.mulf %26, %27 : vector<8x16xf32>
    %cst_32 = arith.constant dense<0xFF800000> : vector<8xf32>
    %29 = vector.multi_reduction <maximumf>, %28, %cst_32 [1] : vector<8x16xf32> to vector<8xf32>
    %30 = vector.shape_cast %29 : vector<8xf32> to vector<8x1xf32>
    %31 = vector.broadcast %30 : vector<8x1xf32> to vector<8x16xf32>
    %32 = arith.subf %28, %31 : vector<8x16xf32>
    %33 = math.exp %32 : vector<8x16xf32>
    %cst_33 = arith.constant dense<0.000000e+00> : vector<8xf32>
    %34 = vector.multi_reduction <add>, %33, %cst_33 [1] : vector<8x16xf32> to vector<8xf32>
    %35 = vector.shape_cast %34 : vector<8xf32> to vector<8x1xf32>
    %36 = vector.broadcast %35 : vector<8x1xf32> to vector<8x16xf32>
    %37 = arith.divf %33, %36 : vector<8x16xf32>
    %c0_34 = arith.constant 0 : index
    %c0_35 = arith.constant 0 : index
    %c0_36 = arith.constant 0 : index
    %38 = vector.load %arg13[%c0_34, %c0_35, %c0_36] : memref<6x8x16xf32, #tpu.memory_space<vmem>>, vector<1x8x16xf32>
    %39 = vector.shape_cast %38 : vector<1x8x16xf32> to vector<8x16xf32>
    %40 = vector.shape_cast %37 : vector<8x16xf32> to vector<1x8x16xf32>
    tpu.vector_store %arg13[%c0_34, %c0_35, %c0_36], %40 {strides = array<i32>} : memref<6x8x16xf32, #tpu.memory_space<vmem>>, vector<1x8x16xf32>,
    %cst_37 = arith.constant dense<0.000000e+00> : vector<8x128xf32>
    %41 = tpu.matmul %37, %3, %cst_37 {dimension_numbers = #tpu.dot_dimension_numbers<[1], [0], [0], [1], [0, 0, 1, 1], [], []>} : vector<8x16xf32>, vector<16x128xf32>, vector<8x128xf32> -> vector<8x128xf32>
    %cst_38 = arith.constant dense<0.000000e+00> : vector<8x128xf32>
    %42 = tpu.matmul %0, %4, %cst_38 {dimension_numbers = #tpu.dot_dimension_numbers<[1], [0], [0], [1], [0, 0, 1, 1], [], []>} : vector<8x32xf32>, vector<32x128xf32>, vector<8x128xf32> -> vector<8x128xf32>
    %43 = arith.addf %41, %42 : vector<8x128xf32>
    %44 = arith.addf %43, %5 : vector<8x128xf32>
    %45 = vector.extract_strided_slice %44 {offsets = [0, 0], sizes = [8, 32], strides = [1, 1]} : vector<8x128xf32> to vector<8x32xf32>
    %46 = arith.negf %45 : vector<8x32xf32>
    %47 = math.exp %46 : vector<8x32xf32>
    %cst_39 = arith.constant 1.000000e+00 : f32
    %48 = vector.broadcast %cst_39 : f32 to vector<8x32xf32>
    %49 = arith.addf %48, %47 : vector<8x32xf32>
    %50 = arith.divf %48, %49 : vector<8x32xf32>
    %51 = vector.extract_strided_slice %44 {offsets = [0, 32], sizes = [8, 32], strides = [1, 1]} : vector<8x128xf32> to vector<8x32xf32>
    %52 = arith.negf %51 : vector<8x32xf32>
    %53 = math.exp %52 : vector<8x32xf32>
    %cst_40 = arith.constant 1.000000e+00 : f32
    %54 = vector.broadcast %cst_40 : f32 to vector<8x32xf32>
    %55 = arith.addf %54, %53 : vector<8x32xf32>
    %56 = arith.divf %54, %55 : vector<8x32xf32>
    %57 = vector.extract_strided_slice %44 {offsets = [0, 64], sizes = [8, 32], strides = [1, 1]} : vector<8x128xf32> to vector<8x32xf32>
    %58 = math.tanh %57 : vector<8x32xf32>
    %59 = vector.extract_strided_slice %44 {offsets = [0, 96], sizes = [8, 32], strides = [1, 1]} : vector<8x128xf32> to vector<8x32xf32>
    %60 = arith.negf %59 : vector<8x32xf32>
    %61 = math.exp %60 : vector<8x32xf32>
    %cst_41 = arith.constant 1.000000e+00 : f32
    %62 = vector.broadcast %cst_41 : f32 to vector<8x32xf32>
    %63 = arith.addf %62, %61 : vector<8x32xf32>
    %64 = arith.divf %62, %63 : vector<8x32xf32>
    %65 = arith.mulf %56, %1 : vector<8x32xf32>
    %66 = arith.mulf %50, %58 : vector<8x32xf32>
    %67 = arith.addf %65, %66 : vector<8x32xf32>
    %68 = math.tanh %67 : vector<8x32xf32>
    %69 = arith.mulf %64, %68 : vector<8x32xf32>
    %cst_42 = arith.constant dense<0.000000e+00> : vector<8x32xf32>
    %70 = tpu.matmul %69, %6, %cst_42 {dimension_numbers = #tpu.dot_dimension_numbers<[1], [0], [0], [1], [0, 0, 1, 1], [], []>} : vector<8x32xf32>, vector<32x32xf32>, vector<8x32xf32> -> vector<8x32xf32>
    %cst_43 = arith.constant dense<0.000000e+00> : vector<8x32xf32>
    %71 = tpu.matmul %67, %7, %cst_43 {dimension_numbers = #tpu.dot_dimension_numbers<[1], [0], [0], [1], [0, 0, 1, 1], [], []>} : vector<8x32xf32>, vector<32x32xf32>, vector<8x32xf32> -> vector<8x32xf32>
    %72 = arith.addf %70, %71 : vector<8x32xf32>
    %73 = arith.addf %72, %2 : vector<8x32xf32>
    %cst_44 = arith.constant 0.000000e+00 : f32
    %74 = vector.broadcast %cst_44 : f32 to vector<8x32xf32>
    %75 = arith.maximumf %73, %74 : vector<8x32xf32>
    %cst_45 = arith.constant dense<0.000000e+00> : vector<8x32xf32>
    %76 = tpu.matmul %75, %8, %cst_45 {dimension_numbers = #tpu.dot_dimension_numbers<[1], [0], [0], [1], [0, 0, 1, 1], [], []>} : vector<8x32xf32>, vector<32x32xf32>, vector<8x32xf32> -> vector<8x32xf32>
    %77 = arith.addf %76, %9 : vector<8x32xf32>
    %cst_46 = arith.constant 0.000000e+00 : f32
    %78 = vector.broadcast %cst_46 : f32 to vector<8x32xf32>
    %79 = arith.maximumf %77, %78 : vector<8x32xf32>
    %cst_47 = arith.constant dense<0.000000e+00> : vector<8x16xf32>
    %80 = tpu.matmul %79, %10, %cst_47 {dimension_numbers = #tpu.dot_dimension_numbers<[1], [0], [0], [1], [0, 0, 1, 1], [], []>} : vector<8x32xf32>, vector<32x16xf32>, vector<8x16xf32> -> vector<8x16xf32>
    %81 = arith.addf %80, %11 : vector<8x16xf32>
    %c1 = arith.constant 1 : index
    %c0_48 = arith.constant 0 : index
    %c0_49 = arith.constant 0 : index
    %82 = vector.load %arg3[%c1, %c0_48, %c0_49] : memref<6x8x16xf32, #tpu.memory_space<vmem>>, vector<1x8x16xf32>
    %83 = vector.shape_cast %82 : vector<1x8x16xf32> to vector<8x16xf32>
    %84 = arith.addf %81, %83 : vector<8x16xf32>
    %cst_50 = arith.constant 5.000000e+00 : f32
    %85 = vector.broadcast %cst_50 : f32 to vector<8x16xf32>
    %86 = arith.mulf %84, %85 : vector<8x16xf32>
    %cst_51 = arith.constant dense<0xFF800000> : vector<8xf32>
    %87 = vector.multi_reduction <maximumf>, %86, %cst_51 [1] : vector<8x16xf32> to vector<8xf32>
    %88 = vector.shape_cast %87 : vector<8xf32> to vector<8x1xf32>
    %89 = vector.broadcast %88 : vector<8x1xf32> to vector<8x16xf32>
    %90 = arith.subf %86, %89 : vector<8x16xf32>
    %91 = math.exp %90 : vector<8x16xf32>
    %cst_52 = arith.constant dense<0.000000e+00> : vector<8xf32>
    %92 = vector.multi_reduction <add>, %91, %cst_52 [1] : vector<8x16xf32> to vector<8xf32>
    %93 = vector.shape_cast %92 : vector<8xf32> to vector<8x1xf32>
    %94 = vector.broadcast %93 : vector<8x1xf32> to vector<8x16xf32>
    %95 = arith.divf %91, %94 : vector<8x16xf32>
    %c1_53 = arith.constant 1 : index
    %c0_54 = arith.constant 0 : index
    %c0_55 = arith.constant 0 : index
    %96 = vector.load %arg13[%c1_53, %c0_54, %c0_55] : memref<6x8x16xf32, #tpu.memory_space<vmem>>, vector<1x8x16xf32>
    %97 = vector.shape_cast %96 : vector<1x8x16xf32> to vector<8x16xf32>
    %98 = vector.shape_cast %95 : vector<8x16xf32> to vector<1x8x16xf32>
    tpu.vector_store %arg13[%c1_53, %c0_54, %c0_55], %98 {strides = array<i32>} : memref<6x8x16xf32, #tpu.memory_space<vmem>>, vector<1x8x16xf32>,
    %cst_56 = arith.constant dense<0.000000e+00> : vector<8x128xf32>
    %99 = tpu.matmul %95, %3, %cst_56 {dimension_numbers = #tpu.dot_dimension_numbers<[1], [0], [0], [1], [0, 0, 1, 1], [], []>} : vector<8x16xf32>, vector<16x128xf32>, vector<8x128xf32> -> vector<8x128xf32>
    %cst_57 = arith.constant dense<0.000000e+00> : vector<8x128xf32>
    %100 = tpu.matmul %69, %4, %cst_57 {dimension_numbers = #tpu.dot_dimension_numbers<[1], [0], [0], [1], [0, 0, 1, 1], [], []>} : vector<8x32xf32>, vector<32x128xf32>, vector<8x128xf32> -> vector<8x128xf32>
    %101 = arith.addf %99, %100 : vector<8x128xf32>
    %102 = arith.addf %101, %5 : vector<8x128xf32>
    %103 = vector.extract_strided_slice %102 {offsets = [0, 0], sizes = [8, 32], strides = [1, 1]} : vector<8x128xf32> to vector<8x32xf32>
    %104 = arith.negf %103 : vector<8x32xf32>
    %105 = math.exp %104 : vector<8x32xf32>
    %cst_58 = arith.constant 1.000000e+00 : f32
    %106 = vector.broadcast %cst_58 : f32 to vector<8x32xf32>
    %107 = arith.addf %106, %105 : vector<8x32xf32>
    %108 = arith.divf %106, %107 : vector<8x32xf32>
    %109 = vector.extract_strided_slice %102 {offsets = [0, 32], sizes = [8, 32], strides = [1, 1]} : vector<8x128xf32> to vector<8x32xf32>
    %110 = arith.negf %109 : vector<8x32xf32>
    %111 = math.exp %110 : vector<8x32xf32>
    %cst_59 = arith.constant 1.000000e+00 : f32
    %112 = vector.broadcast %cst_59 : f32 to vector<8x32xf32>
    %113 = arith.addf %112, %111 : vector<8x32xf32>
    %114 = arith.divf %112, %113 : vector<8x32xf32>
    %115 = vector.extract_strided_slice %102 {offsets = [0, 64], sizes = [8, 32], strides = [1, 1]} : vector<8x128xf32> to vector<8x32xf32>
    %116 = math.tanh %115 : vector<8x32xf32>
    %117 = vector.extract_strided_slice %102 {offsets = [0, 96], sizes = [8, 32], strides = [1, 1]} : vector<8x128xf32> to vector<8x32xf32>
    %118 = arith.negf %117 : vector<8x32xf32>
    %119 = math.exp %118 : vector<8x32xf32>
    %cst_60 = arith.constant 1.000000e+00 : f32
    %120 = vector.broadcast %cst_60 : f32 to vector<8x32xf32>
    %121 = arith.addf %120, %119 : vector<8x32xf32>
    %122 = arith.divf %120, %121 : vector<8x32xf32>
    %123 = arith.mulf %114, %67 : vector<8x32xf32>
    %124 = arith.mulf %108, %116 : vector<8x32xf32>
    %125 = arith.addf %123, %124 : vector<8x32xf32>
    %126 = math.tanh %125 : vector<8x32xf32>
    %127 = arith.mulf %122, %126 : vector<8x32xf32>
    %cst_61 = arith.constant dense<0.000000e+00> : vector<8x32xf32>
    %128 = tpu.matmul %127, %6, %cst_61 {dimension_numbers = #tpu.dot_dimension_numbers<[1], [0], [0], [1], [0, 0, 1, 1], [], []>} : vector<8x32xf32>, vector<32x32xf32>, vector<8x32xf32> -> vector<8x32xf32>
    %cst_62 = arith.constant dense<0.000000e+00> : vector<8x32xf32>
    %129 = tpu.matmul %125, %7, %cst_62 {dimension_numbers = #tpu.dot_dimension_numbers<[1], [0], [0], [1], [0, 0, 1, 1], [], []>} : vector<8x32xf32>, vector<32x32xf32>, vector<8x32xf32> -> vector<8x32xf32>
    %130 = arith.addf %128, %129 : vector<8x32xf32>
    %131 = arith.addf %130, %2 : vector<8x32xf32>
    %cst_63 = arith.constant 0.000000e+00 : f32
    %132 = vector.broadcast %cst_63 : f32 to vector<8x32xf32>
    %133 = arith.maximumf %131, %132 : vector<8x32xf32>
    %cst_64 = arith.constant dense<0.000000e+00> : vector<8x32xf32>
    %134 = tpu.matmul %133, %8, %cst_64 {dimension_numbers = #tpu.dot_dimension_numbers<[1], [0], [0], [1], [0, 0, 1, 1], [], []>} : vector<8x32xf32>, vector<32x32xf32>, vector<8x32xf32> -> vector<8x32xf32>
    %135 = arith.addf %134, %9 : vector<8x32xf32>
    %cst_65 = arith.constant 0.000000e+00 : f32
    %136 = vector.broadcast %cst_65 : f32 to vector<8x32xf32>
    %137 = arith.maximumf %135, %136 : vector<8x32xf32>
    %cst_66 = arith.constant dense<0.000000e+00> : vector<8x16xf32>
    %138 = tpu.matmul %137, %10, %cst_66 {dimension_numbers = #tpu.dot_dimension_numbers<[1], [0], [0], [1], [0, 0, 1, 1], [], []>} : vector<8x32xf32>, vector<32x16xf32>, vector<8x16xf32> -> vector<8x16xf32>
    %139 = arith.addf %138, %11 : vector<8x16xf32>
    %c2 = arith.constant 2 : index
    %c0_67 = arith.constant 0 : index
    %c0_68 = arith.constant 0 : index
    %140 = vector.load %arg3[%c2, %c0_67, %c0_68] : memref<6x8x16xf32, #tpu.memory_space<vmem>>, vector<1x8x16xf32>
    %141 = vector.shape_cast %140 : vector<1x8x16xf32> to vector<8x16xf32>
    %142 = arith.addf %139, %141 : vector<8x16xf32>
    %cst_69 = arith.constant 5.000000e+00 : f32
    %143 = vector.broadcast %cst_69 : f32 to vector<8x16xf32>
    %144 = arith.mulf %142, %143 : vector<8x16xf32>
    %cst_70 = arith.constant dense<0xFF800000> : vector<8xf32>
    %145 = vector.multi_reduction <maximumf>, %144, %cst_70 [1] : vector<8x16xf32> to vector<8xf32>
    %146 = vector.shape_cast %145 : vector<8xf32> to vector<8x1xf32>
    %147 = vector.broadcast %146 : vector<8x1xf32> to vector<8x16xf32>
    %148 = arith.subf %144, %147 : vector<8x16xf32>
    %149 = math.exp %148 : vector<8x16xf32>
    %cst_71 = arith.constant dense<0.000000e+00> : vector<8xf32>
    %150 = vector.multi_reduction <add>, %149, %cst_71 [1] : vector<8x16xf32> to vector<8xf32>
    %151 = vector.shape_cast %150 : vector<8xf32> to vector<8x1xf32>
    %152 = vector.broadcast %151 : vector<8x1xf32> to vector<8x16xf32>
    %153 = arith.divf %149, %152 : vector<8x16xf32>
    %c2_72 = arith.constant 2 : index
    %c0_73 = arith.constant 0 : index
    %c0_74 = arith.constant 0 : index
    %154 = vector.load %arg13[%c2_72, %c0_73, %c0_74] : memref<6x8x16xf32, #tpu.memory_space<vmem>>, vector<1x8x16xf32>
    %155 = vector.shape_cast %154 : vector<1x8x16xf32> to vector<8x16xf32>
    %156 = vector.shape_cast %153 : vector<8x16xf32> to vector<1x8x16xf32>
    tpu.vector_store %arg13[%c2_72, %c0_73, %c0_74], %156 {strides = array<i32>} : memref<6x8x16xf32, #tpu.memory_space<vmem>>, vector<1x8x16xf32>,
    %cst_75 = arith.constant dense<0.000000e+00> : vector<8x128xf32>
    %157 = tpu.matmul %153, %3, %cst_75 {dimension_numbers = #tpu.dot_dimension_numbers<[1], [0], [0], [1], [0, 0, 1, 1], [], []>} : vector<8x16xf32>, vector<16x128xf32>, vector<8x128xf32> -> vector<8x128xf32>
    %cst_76 = arith.constant dense<0.000000e+00> : vector<8x128xf32>
    %158 = tpu.matmul %127, %4, %cst_76 {dimension_numbers = #tpu.dot_dimension_numbers<[1], [0], [0], [1], [0, 0, 1, 1], [], []>} : vector<8x32xf32>, vector<32x128xf32>, vector<8x128xf32> -> vector<8x128xf32>
    %159 = arith.addf %157, %158 : vector<8x128xf32>
    %160 = arith.addf %159, %5 : vector<8x128xf32>
    %161 = vector.extract_strided_slice %160 {offsets = [0, 0], sizes = [8, 32], strides = [1, 1]} : vector<8x128xf32> to vector<8x32xf32>
    %162 = arith.negf %161 : vector<8x32xf32>
    %163 = math.exp %162 : vector<8x32xf32>
    %cst_77 = arith.constant 1.000000e+00 : f32
    %164 = vector.broadcast %cst_77 : f32 to vector<8x32xf32>
    %165 = arith.addf %164, %163 : vector<8x32xf32>
    %166 = arith.divf %164, %165 : vector<8x32xf32>
    %167 = vector.extract_strided_slice %160 {offsets = [0, 32], sizes = [8, 32], strides = [1, 1]} : vector<8x128xf32> to vector<8x32xf32>
    %168 = arith.negf %167 : vector<8x32xf32>
    %169 = math.exp %168 : vector<8x32xf32>
    %cst_78 = arith.constant 1.000000e+00 : f32
    %170 = vector.broadcast %cst_78 : f32 to vector<8x32xf32>
    %171 = arith.addf %170, %169 : vector<8x32xf32>
    %172 = arith.divf %170, %171 : vector<8x32xf32>
    %173 = vector.extract_strided_slice %160 {offsets = [0, 64], sizes = [8, 32], strides = [1, 1]} : vector<8x128xf32> to vector<8x32xf32>
    %174 = math.tanh %173 : vector<8x32xf32>
    %175 = vector.extract_strided_slice %160 {offsets = [0, 96], sizes = [8, 32], strides = [1, 1]} : vector<8x128xf32> to vector<8x32xf32>
    %176 = arith.negf %175 : vector<8x32xf32>
    %177 = math.exp %176 : vector<8x32xf32>
    %cst_79 = arith.constant 1.000000e+00 : f32
    %178 = vector.broadcast %cst_79 : f32 to vector<8x32xf32>
    %179 = arith.addf %178, %177 : vector<8x32xf32>
    %180 = arith.divf %178, %179 : vector<8x32xf32>
    %181 = arith.mulf %172, %125 : vector<8x32xf32>
    %182 = arith.mulf %166, %174 : vector<8x32xf32>
    %183 = arith.addf %181, %182 : vector<8x32xf32>
    %184 = math.tanh %183 : vector<8x32xf32>
    %185 = arith.mulf %180, %184 : vector<8x32xf32>
    %cst_80 = arith.constant dense<0.000000e+00> : vector<8x32xf32>
    %186 = tpu.matmul %185, %6, %cst_80 {dimension_numbers = #tpu.dot_dimension_numbers<[1], [0], [0], [1], [0, 0, 1, 1], [], []>} : vector<8x32xf32>, vector<32x32xf32>, vector<8x32xf32> -> vector<8x32xf32>
    %cst_81 = arith.constant dense<0.000000e+00> : vector<8x32xf32>
    %187 = tpu.matmul %183, %7, %cst_81 {dimension_numbers = #tpu.dot_dimension_numbers<[1], [0], [0], [1], [0, 0, 1, 1], [], []>} : vector<8x32xf32>, vector<32x32xf32>, vector<8x32xf32> -> vector<8x32xf32>
    %188 = arith.addf %186, %187 : vector<8x32xf32>
    %189 = arith.addf %188, %2 : vector<8x32xf32>
    %cst_82 = arith.constant 0.000000e+00 : f32
    %190 = vector.broadcast %cst_82 : f32 to vector<8x32xf32>
    %191 = arith.maximumf %189, %190 : vector<8x32xf32>
    %cst_83 = arith.constant dense<0.000000e+00> : vector<8x32xf32>
    %192 = tpu.matmul %191, %8, %cst_83 {dimension_numbers = #tpu.dot_dimension_numbers<[1], [0], [0], [1], [0, 0, 1, 1], [], []>} : vector<8x32xf32>, vector<32x32xf32>, vector<8x32xf32> -> vector<8x32xf32>
    %193 = arith.addf %192, %9 : vector<8x32xf32>
    %cst_84 = arith.constant 0.000000e+00 : f32
    %194 = vector.broadcast %cst_84 : f32 to vector<8x32xf32>
    %195 = arith.maximumf %193, %194 : vector<8x32xf32>
    %cst_85 = arith.constant dense<0.000000e+00> : vector<8x16xf32>
    %196 = tpu.matmul %195, %10, %cst_85 {dimension_numbers = #tpu.dot_dimension_numbers<[1], [0], [0], [1], [0, 0, 1, 1], [], []>} : vector<8x32xf32>, vector<32x16xf32>, vector<8x16xf32> -> vector<8x16xf32>
    %197 = arith.addf %196, %11 : vector<8x16xf32>
    %c3 = arith.constant 3 : index
    %c0_86 = arith.constant 0 : index
    %c0_87 = arith.constant 0 : index
    %198 = vector.load %arg3[%c3, %c0_86, %c0_87] : memref<6x8x16xf32, #tpu.memory_space<vmem>>, vector<1x8x16xf32>
    %199 = vector.shape_cast %198 : vector<1x8x16xf32> to vector<8x16xf32>
    %200 = arith.addf %197, %199 : vector<8x16xf32>
    %cst_88 = arith.constant 5.000000e+00 : f32
    %201 = vector.broadcast %cst_88 : f32 to vector<8x16xf32>
    %202 = arith.mulf %200, %201 : vector<8x16xf32>
    %cst_89 = arith.constant dense<0xFF800000> : vector<8xf32>
    %203 = vector.multi_reduction <maximumf>, %202, %cst_89 [1] : vector<8x16xf32> to vector<8xf32>
    %204 = vector.shape_cast %203 : vector<8xf32> to vector<8x1xf32>
    %205 = vector.broadcast %204 : vector<8x1xf32> to vector<8x16xf32>
    %206 = arith.subf %202, %205 : vector<8x16xf32>
    %207 = math.exp %206 : vector<8x16xf32>
    %cst_90 = arith.constant dense<0.000000e+00> : vector<8xf32>
    %208 = vector.multi_reduction <add>, %207, %cst_90 [1] : vector<8x16xf32> to vector<8xf32>
    %209 = vector.shape_cast %208 : vector<8xf32> to vector<8x1xf32>
    %210 = vector.broadcast %209 : vector<8x1xf32> to vector<8x16xf32>
    %211 = arith.divf %207, %210 : vector<8x16xf32>
    %c3_91 = arith.constant 3 : index
    %c0_92 = arith.constant 0 : index
    %c0_93 = arith.constant 0 : index
    %212 = vector.load %arg13[%c3_91, %c0_92, %c0_93] : memref<6x8x16xf32, #tpu.memory_space<vmem>>, vector<1x8x16xf32>
    %213 = vector.shape_cast %212 : vector<1x8x16xf32> to vector<8x16xf32>
    %214 = vector.shape_cast %211 : vector<8x16xf32> to vector<1x8x16xf32>
    tpu.vector_store %arg13[%c3_91, %c0_92, %c0_93], %214 {strides = array<i32>} : memref<6x8x16xf32, #tpu.memory_space<vmem>>, vector<1x8x16xf32>,
    %cst_94 = arith.constant dense<0.000000e+00> : vector<8x128xf32>
    %215 = tpu.matmul %211, %3, %cst_94 {dimension_numbers = #tpu.dot_dimension_numbers<[1], [0], [0], [1], [0, 0, 1, 1], [], []>} : vector<8x16xf32>, vector<16x128xf32>, vector<8x128xf32> -> vector<8x128xf32>
    %cst_95 = arith.constant dense<0.000000e+00> : vector<8x128xf32>
    %216 = tpu.matmul %185, %4, %cst_95 {dimension_numbers = #tpu.dot_dimension_numbers<[1], [0], [0], [1], [0, 0, 1, 1], [], []>} : vector<8x32xf32>, vector<32x128xf32>, vector<8x128xf32> -> vector<8x128xf32>
    %217 = arith.addf %215, %216 : vector<8x128xf32>
    %218 = arith.addf %217, %5 : vector<8x128xf32>
    %219 = vector.extract_strided_slice %218 {offsets = [0, 0], sizes = [8, 32], strides = [1, 1]} : vector<8x128xf32> to vector<8x32xf32>
    %220 = arith.negf %219 : vector<8x32xf32>
    %221 = math.exp %220 : vector<8x32xf32>
    %cst_96 = arith.constant 1.000000e+00 : f32
    %222 = vector.broadcast %cst_96 : f32 to vector<8x32xf32>
    %223 = arith.addf %222, %221 : vector<8x32xf32>
    %224 = arith.divf %222, %223 : vector<8x32xf32>
    %225 = vector.extract_strided_slice %218 {offsets = [0, 32], sizes = [8, 32], strides = [1, 1]} : vector<8x128xf32> to vector<8x32xf32>
    %226 = arith.negf %225 : vector<8x32xf32>
    %227 = math.exp %226 : vector<8x32xf32>
    %cst_97 = arith.constant 1.000000e+00 : f32
    %228 = vector.broadcast %cst_97 : f32 to vector<8x32xf32>
    %229 = arith.addf %228, %227 : vector<8x32xf32>
    %230 = arith.divf %228, %229 : vector<8x32xf32>
    %231 = vector.extract_strided_slice %218 {offsets = [0, 64], sizes = [8, 32], strides = [1, 1]} : vector<8x128xf32> to vector<8x32xf32>
    %232 = math.tanh %231 : vector<8x32xf32>
    %233 = vector.extract_strided_slice %218 {offsets = [0, 96], sizes = [8, 32], strides = [1, 1]} : vector<8x128xf32> to vector<8x32xf32>
    %234 = arith.negf %233 : vector<8x32xf32>
    %235 = math.exp %234 : vector<8x32xf32>
    %cst_98 = arith.constant 1.000000e+00 : f32
    %236 = vector.broadcast %cst_98 : f32 to vector<8x32xf32>
    %237 = arith.addf %236, %235 : vector<8x32xf32>
    %238 = arith.divf %236, %237 : vector<8x32xf32>
    %239 = arith.mulf %230, %183 : vector<8x32xf32>
    %240 = arith.mulf %224, %232 : vector<8x32xf32>
    %241 = arith.addf %239, %240 : vector<8x32xf32>
    %242 = math.tanh %241 : vector<8x32xf32>
    %243 = arith.mulf %238, %242 : vector<8x32xf32>
    %cst_99 = arith.constant dense<0.000000e+00> : vector<8x32xf32>
    %244 = tpu.matmul %243, %6, %cst_99 {dimension_numbers = #tpu.dot_dimension_numbers<[1], [0], [0], [1], [0, 0, 1, 1], [], []>} : vector<8x32xf32>, vector<32x32xf32>, vector<8x32xf32> -> vector<8x32xf32>
    %cst_100 = arith.constant dense<0.000000e+00> : vector<8x32xf32>
    %245 = tpu.matmul %241, %7, %cst_100 {dimension_numbers = #tpu.dot_dimension_numbers<[1], [0], [0], [1], [0, 0, 1, 1], [], []>} : vector<8x32xf32>, vector<32x32xf32>, vector<8x32xf32> -> vector<8x32xf32>
    %246 = arith.addf %244, %245 : vector<8x32xf32>
    %247 = arith.addf %246, %2 : vector<8x32xf32>
    %cst_101 = arith.constant 0.000000e+00 : f32
    %248 = vector.broadcast %cst_101 : f32 to vector<8x32xf32>
    %249 = arith.maximumf %247, %248 : vector<8x32xf32>
    %cst_102 = arith.constant dense<0.000000e+00> : vector<8x32xf32>
    %250 = tpu.matmul %249, %8, %cst_102 {dimension_numbers = #tpu.dot_dimension_numbers<[1], [0], [0], [1], [0, 0, 1, 1], [], []>} : vector<8x32xf32>, vector<32x32xf32>, vector<8x32xf32> -> vector<8x32xf32>
    %251 = arith.addf %250, %9 : vector<8x32xf32>
    %cst_103 = arith.constant 0.000000e+00 : f32
    %252 = vector.broadcast %cst_103 : f32 to vector<8x32xf32>
    %253 = arith.maximumf %251, %252 : vector<8x32xf32>
    %cst_104 = arith.constant dense<0.000000e+00> : vector<8x16xf32>
    %254 = tpu.matmul %253, %10, %cst_104 {dimension_numbers = #tpu.dot_dimension_numbers<[1], [0], [0], [1], [0, 0, 1, 1], [], []>} : vector<8x32xf32>, vector<32x16xf32>, vector<8x16xf32> -> vector<8x16xf32>
    %255 = arith.addf %254, %11 : vector<8x16xf32>
    %c4 = arith.constant 4 : index
    %c0_105 = arith.constant 0 : index
    %c0_106 = arith.constant 0 : index
    %256 = vector.load %arg3[%c4, %c0_105, %c0_106] : memref<6x8x16xf32, #tpu.memory_space<vmem>>, vector<1x8x16xf32>
    %257 = vector.shape_cast %256 : vector<1x8x16xf32> to vector<8x16xf32>
    %258 = arith.addf %255, %257 : vector<8x16xf32>
    %cst_107 = arith.constant 5.000000e+00 : f32
    %259 = vector.broadcast %cst_107 : f32 to vector<8x16xf32>
    %260 = arith.mulf %258, %259 : vector<8x16xf32>
    %cst_108 = arith.constant dense<0xFF800000> : vector<8xf32>
    %261 = vector.multi_reduction <maximumf>, %260, %cst_108 [1] : vector<8x16xf32> to vector<8xf32>
    %262 = vector.shape_cast %261 : vector<8xf32> to vector<8x1xf32>
    %263 = vector.broadcast %262 : vector<8x1xf32> to vector<8x16xf32>
    %264 = arith.subf %260, %263 : vector<8x16xf32>
    %265 = math.exp %264 : vector<8x16xf32>
    %cst_109 = arith.constant dense<0.000000e+00> : vector<8xf32>
    %266 = vector.multi_reduction <add>, %265, %cst_109 [1] : vector<8x16xf32> to vector<8xf32>
    %267 = vector.shape_cast %266 : vector<8xf32> to vector<8x1xf32>
    %268 = vector.broadcast %267 : vector<8x1xf32> to vector<8x16xf32>
    %269 = arith.divf %265, %268 : vector<8x16xf32>
    %c4_110 = arith.constant 4 : index
    %c0_111 = arith.constant 0 : index
    %c0_112 = arith.constant 0 : index
    %270 = vector.load %arg13[%c4_110, %c0_111, %c0_112] : memref<6x8x16xf32, #tpu.memory_space<vmem>>, vector<1x8x16xf32>
    %271 = vector.shape_cast %270 : vector<1x8x16xf32> to vector<8x16xf32>
    %272 = vector.shape_cast %269 : vector<8x16xf32> to vector<1x8x16xf32>
    tpu.vector_store %arg13[%c4_110, %c0_111, %c0_112], %272 {strides = array<i32>} : memref<6x8x16xf32, #tpu.memory_space<vmem>>, vector<1x8x16xf32>,
    %cst_113 = arith.constant dense<0.000000e+00> : vector<8x128xf32>
    %273 = tpu.matmul %269, %3, %cst_113 {dimension_numbers = #tpu.dot_dimension_numbers<[1], [0], [0], [1], [0, 0, 1, 1], [], []>} : vector<8x16xf32>, vector<16x128xf32>, vector<8x128xf32> -> vector<8x128xf32>
    %cst_114 = arith.constant dense<0.000000e+00> : vector<8x128xf32>
    %274 = tpu.matmul %243, %4, %cst_114 {dimension_numbers = #tpu.dot_dimension_numbers<[1], [0], [0], [1], [0, 0, 1, 1], [], []>} : vector<8x32xf32>, vector<32x128xf32>, vector<8x128xf32> -> vector<8x128xf32>
    %275 = arith.addf %273, %274 : vector<8x128xf32>
    %276 = arith.addf %275, %5 : vector<8x128xf32>
    %277 = vector.extract_strided_slice %276 {offsets = [0, 0], sizes = [8, 32], strides = [1, 1]} : vector<8x128xf32> to vector<8x32xf32>
    %278 = arith.negf %277 : vector<8x32xf32>
    %279 = math.exp %278 : vector<8x32xf32>
    %cst_115 = arith.constant 1.000000e+00 : f32
    %280 = vector.broadcast %cst_115 : f32 to vector<8x32xf32>
    %281 = arith.addf %280, %279 : vector<8x32xf32>
    %282 = arith.divf %280, %281 : vector<8x32xf32>
    %283 = vector.extract_strided_slice %276 {offsets = [0, 32], sizes = [8, 32], strides = [1, 1]} : vector<8x128xf32> to vector<8x32xf32>
    %284 = arith.negf %283 : vector<8x32xf32>
    %285 = math.exp %284 : vector<8x32xf32>
    %cst_116 = arith.constant 1.000000e+00 : f32
    %286 = vector.broadcast %cst_116 : f32 to vector<8x32xf32>
    %287 = arith.addf %286, %285 : vector<8x32xf32>
    %288 = arith.divf %286, %287 : vector<8x32xf32>
    %289 = vector.extract_strided_slice %276 {offsets = [0, 64], sizes = [8, 32], strides = [1, 1]} : vector<8x128xf32> to vector<8x32xf32>
    %290 = math.tanh %289 : vector<8x32xf32>
    %291 = vector.extract_strided_slice %276 {offsets = [0, 96], sizes = [8, 32], strides = [1, 1]} : vector<8x128xf32> to vector<8x32xf32>
    %292 = arith.negf %291 : vector<8x32xf32>
    %293 = math.exp %292 : vector<8x32xf32>
    %cst_117 = arith.constant 1.000000e+00 : f32
    %294 = vector.broadcast %cst_117 : f32 to vector<8x32xf32>
    %295 = arith.addf %294, %293 : vector<8x32xf32>
    %296 = arith.divf %294, %295 : vector<8x32xf32>
    %297 = arith.mulf %288, %241 : vector<8x32xf32>
    %298 = arith.mulf %282, %290 : vector<8x32xf32>
    %299 = arith.addf %297, %298 : vector<8x32xf32>
    %300 = math.tanh %299 : vector<8x32xf32>
    %301 = arith.mulf %296, %300 : vector<8x32xf32>
    %cst_118 = arith.constant dense<0.000000e+00> : vector<8x32xf32>
    %302 = tpu.matmul %301, %6, %cst_118 {dimension_numbers = #tpu.dot_dimension_numbers<[1], [0], [0], [1], [0, 0, 1, 1], [], []>} : vector<8x32xf32>, vector<32x32xf32>, vector<8x32xf32> -> vector<8x32xf32>
    %cst_119 = arith.constant dense<0.000000e+00> : vector<8x32xf32>
    %303 = tpu.matmul %299, %7, %cst_119 {dimension_numbers = #tpu.dot_dimension_numbers<[1], [0], [0], [1], [0, 0, 1, 1], [], []>} : vector<8x32xf32>, vector<32x32xf32>, vector<8x32xf32> -> vector<8x32xf32>
    %304 = arith.addf %302, %303 : vector<8x32xf32>
    %305 = arith.addf %304, %2 : vector<8x32xf32>
    %cst_120 = arith.constant 0.000000e+00 : f32
    %306 = vector.broadcast %cst_120 : f32 to vector<8x32xf32>
    %307 = arith.maximumf %305, %306 : vector<8x32xf32>
    %cst_121 = arith.constant dense<0.000000e+00> : vector<8x32xf32>
    %308 = tpu.matmul %307, %8, %cst_121 {dimension_numbers = #tpu.dot_dimension_numbers<[1], [0], [0], [1], [0, 0, 1, 1], [], []>} : vector<8x32xf32>, vector<32x32xf32>, vector<8x32xf32> -> vector<8x32xf32>
    %309 = arith.addf %308, %9 : vector<8x32xf32>
    %cst_122 = arith.constant 0.000000e+00 : f32
    %310 = vector.broadcast %cst_122 : f32 to vector<8x32xf32>
    %311 = arith.maximumf %309, %310 : vector<8x32xf32>
    %cst_123 = arith.constant dense<0.000000e+00> : vector<8x16xf32>
    %312 = tpu.matmul %311, %10, %cst_123 {dimension_numbers = #tpu.dot_dimension_numbers<[1], [0], [0], [1], [0, 0, 1, 1], [], []>} : vector<8x32xf32>, vector<32x16xf32>, vector<8x16xf32> -> vector<8x16xf32>
    %313 = arith.addf %312, %11 : vector<8x16xf32>
    %c5 = arith.constant 5 : index
    %c0_124 = arith.constant 0 : index
    %c0_125 = arith.constant 0 : index
    %314 = vector.load %arg3[%c5, %c0_124, %c0_125] : memref<6x8x16xf32, #tpu.memory_space<vmem>>, vector<1x8x16xf32>
    %315 = vector.shape_cast %314 : vector<1x8x16xf32> to vector<8x16xf32>
    %316 = arith.addf %313, %315 : vector<8x16xf32>
    %cst_126 = arith.constant 5.000000e+00 : f32
    %317 = vector.broadcast %cst_126 : f32 to vector<8x16xf32>
    %318 = arith.mulf %316, %317 : vector<8x16xf32>
    %cst_127 = arith.constant dense<0xFF800000> : vector<8xf32>
    %319 = vector.multi_reduction <maximumf>, %318, %cst_127 [1] : vector<8x16xf32> to vector<8xf32>
    %320 = vector.shape_cast %319 : vector<8xf32> to vector<8x1xf32>
    %321 = vector.broadcast %320 : vector<8x1xf32> to vector<8x16xf32>
    %322 = arith.subf %318, %321 : vector<8x16xf32>
    %323 = math.exp %322 : vector<8x16xf32>
    %cst_128 = arith.constant dense<0.000000e+00> : vector<8xf32>
    %324 = vector.multi_reduction <add>, %323, %cst_128 [1] : vector<8x16xf32> to vector<8xf32>
    %325 = vector.shape_cast %324 : vector<8xf32> to vector<8x1xf32>
    %326 = vector.broadcast %325 : vector<8x1xf32> to vector<8x16xf32>
    %327 = arith.divf %323, %326 : vector<8x16xf32>
    %c5_129 = arith.constant 5 : index
    %c0_130 = arith.constant 0 : index
    %c0_131 = arith.constant 0 : index
    %328 = vector.load %arg13[%c5_129, %c0_130, %c0_131] : memref<6x8x16xf32, #tpu.memory_space<vmem>>, vector<1x8x16xf32>
    %329 = vector.shape_cast %328 : vector<1x8x16xf32> to vector<8x16xf32>
    %330 = vector.shape_cast %327 : vector<8x16xf32> to vector<1x8x16xf32>
    tpu.vector_store %arg13[%c5_129, %c0_130, %c0_131], %330 {strides = array<i32>} : memref<6x8x16xf32, #tpu.memory_space<vmem>>, vector<1x8x16xf32>,
    return
  }
}

</mosaic_0001>

<llo_original>
// kernel: oracle_forward.1
$region0: #{oracle_forward.1}
  #allocation0 [shape = 'u32[]', space=smem, size = 0x4, offset = 0x4, fixed_abs, tag = 'smem constant byte address 0x4 - core index']
  #allocation1 [shape = 'u32[72,128]{1,0:T(1,128)}', space=vmem, size = 0x9000, scoped, tag = 'internal scratch']
  %s0 = inlined_call_operand.vmem [shape: f32[8,32], index: 0, kind: input, shape index: {}]
  %s1 = inlined_call_operand.vmem [shape: f32[8,32], index: 1, kind: input, shape index: {}]
  %s2 = inlined_call_operand.vmem [shape: f32[8,32], index: 2, kind: input, shape index: {}]
  %s3 = inlined_call_operand.vmem [shape: f32[6,8,16], index: 3, kind: input, shape index: {}]
  %s4 = inlined_call_operand.vmem [shape: f32[16,128], index: 4, kind: input, shape index: {}]
  %s5 = inlined_call_operand.vmem [shape: f32[32,128], index: 5, kind: input, shape index: {}]
  %s6 = inlined_call_operand.vmem [shape: f32[8,128], index: 6, kind: input, shape index: {}]
  %s7 = inlined_call_operand.vmem [shape: f32[32,32], index: 7, kind: input, shape index: {}]
  %s8 = inlined_call_operand.vmem [shape: f32[32,32], index: 8, kind: input, shape index: {}]
  %s9 = inlined_call_operand.hbm [shape: f32[32,32], index: 9, kind: input, shape index: {}]
  %s10 = inlined_call_operand.vmem [shape: f32[8,32], index: 10, kind: input, shape index: {}]
  %s11 = inlined_call_operand.vmem [shape: f32[32,16], index: 11, kind: input, shape index: {}]
  %s12 = inlined_call_operand.vmem [shape: f32[8,16], index: 12, kind: input, shape index: {}]
  %s13 = inlined_call_operand.vmem [shape: f32[6,8,16], index: 13, kind: output, shape index: {}]
  %s14 = sld [smem:[#allocation0]]
  $region66: #{oracle_forward.1} parent=0
    _
  %s16 = ssub.s32 1, %s14
  %s17 = scalar_select 0, %s16, %s14
  $region1: #{oracle_forward.1} parent=0
    #allocation2 [shape = 'u8[16384]{0}', space=vmem, size = 0x4000, scoped, tag = 'input window, operand 9, single buffered']
    #allocation3 [shape = 's32[1]{0}', space=sflag, size = 0x4, scoped, tag = 'scoped memory for oracle_forward.1']
    %18 = vsyncpa [#allocation3], 0
    // Predicated region
    $region2: #{oracle_forward.1} parent=1 // pred_check
      _
    $region3: #{oracle_forward.1} parent=1 // pred_check_branch
      %20 = sbr.rel (0) target = $region5
    $region4: #{oracle_forward.1} parent=1 // pred_region
      _
    $region5: #{oracle_forward.1} parent=1 // pred_fallthru
      _
    // Predicated region
    $region6: #{oracle_forward.1} parent=1 // pred_check
      _
    $region7: #{oracle_forward.1} parent=1 // pred_check_branch
      %22 = sbr.rel (0) target = $region9
    $region8: #{oracle_forward.1} parent=1 // pred_region
      _
    $region9: #{oracle_forward.1} parent=1 // pred_fallthru
      _
    // Predicated region
    $region10: #{oracle_forward.1} parent=1 // pred_check
      _
    $region11: #{oracle_forward.1} parent=1 // pred_check_branch
      %24 = sbr.rel (0) target = $region13
    $region12: #{oracle_forward.1} parent=1 // pred_region
      _
    $region13: #{oracle_forward.1} parent=1 // pred_fallthru
      _
    // Predicated region
    $region14: #{oracle_forward.1} parent=1 // pred_check
      _
    $region15: #{oracle_forward.1} parent=1 // pred_check_branch
      %26 = sbr.rel (0) target = $region17
    $region16: #{oracle_forward.1} parent=1 // pred_region
      _
    $region17: #{oracle_forward.1} parent=1 // pred_fallthru
      _
    // Predicated region
    $region18: #{oracle_forward.1} parent=1 // pred_check
      _
    $region19: #{oracle_forward.1} parent=1 // pred_check_branch
      %28 = sbr.rel (0) target = $region21
    $region20: #{oracle_forward.1} parent=1 // pred_region
      _
    $region21: #{oracle_forward.1} parent=1 // pred_fallthru
      _
    // Predicated region
    $region22: #{oracle_forward.1} parent=1 // pred_check
      _
    $region23: #{oracle_forward.1} parent=1 // pred_check_branch
      %30 = sbr.rel (0) target = $region25
    $region24: #{oracle_forward.1} parent=1 // pred_region
      _
    $region25: #{oracle_forward.1} parent=1 // pred_fallthru
      _
    // Predicated region
    $region26: #{oracle_forward.1} parent=1 // pred_check
      _
    $region27: #{oracle_forward.1} parent=1 // pred_check_branch
      %32 = sbr.rel (0) target = $region29
    $region28: #{oracle_forward.1} parent=1 // pred_region
      _
    $region29: #{oracle_forward.1} parent=1 // pred_fallthru
      _
    // Predicated region
    $region30: #{oracle_forward.1} parent=1 // pred_check
      _
    $region31: #{oracle_forward.1} parent=1 // pred_check_branch
      %34 = sbr.rel (0) target = $region33
    $region32: #{oracle_forward.1} parent=1 // pred_region
      _
    $region33: #{oracle_forward.1} parent=1 // pred_fallthru
      _
    // Predicated region
    $region34: #{oracle_forward.1} parent=1 // pred_check
      _
    $region35: #{oracle_forward.1} parent=1 // pred_check_branch
      %36 = sbr.rel (0) target = $region37
    $region36: #{oracle_forward.1} parent=1 // pred_region
      _
    $region37: #{oracle_forward.1} parent=1 // pred_fallthru
      _
    // Predicated region
    $region38: #{oracle_forward.1} parent=1 // pred_check
      _
    $region39: #{oracle_forward.1} parent=1 // pred_check_branch
      %38 = sbr.rel (0) target = $region41
    $region40: #{oracle_forward.1} parent=1 // pred_region
      %40 = vsyncadd [#allocation3], 0
      %s41 = sshll.u32 %s9, 4
      %s42 = int_to_ptr.hbm [resolvable:$true] %s41
      %s43 = sshll.u32 [#allocation2], 4
      %s44 = int_to_ptr.vmem [resolvable:$true] %s43
      %49 = dma.hbm_to_vmem [thread:$0]  %s42, 512, %s44, [#allocation3], 128, 128, 8
    $region41: #{oracle_forward.1} parent=1 // pred_fallthru
      _
    // Predicated region
    $region42: #{oracle_forward.1} parent=1 // pred_check
      _
    $region43: #{oracle_forward.1} parent=1 // pred_check_branch
      %51 = sbr.rel (0) target = $region45
    $region44: #{oracle_forward.1} parent=1 // pred_region
      _
    $region45: #{oracle_forward.1} parent=1 // pred_fallthru
      _
    // Predicated region
    $region46: #{oracle_forward.1} parent=1 // pred_check
      _
    $region47: #{oracle_forward.1} parent=1 // pred_check_branch
      %53 = sbr.rel (0) target = $region49
    $region48: #{oracle_forward.1} parent=1 // pred_region
      _
    $region49: #{oracle_forward.1} parent=1 // pred_fallthru
      _
    // Predicated region
    $region50: #{oracle_forward.1} parent=1 // pred_check
      _
    $region51: #{oracle_forward.1} parent=1 // pred_check_branch
      %55 = sbr.rel (0) target = $region53
    $region52: #{oracle_forward.1} parent=1 // pred_region
      _
    $region53: #{oracle_forward.1} parent=1 // pred_fallthru
      _
    // Predicated region
    $region54: #{oracle_forward.1} parent=1 // pred_check
      _
    $region55: #{oracle_forward.1} parent=1 // pred_check_branch
      %57 = sbr.rel (0) target = $region57
    $region56: #{oracle_forward.1} parent=1 // pred_region
      %59 = dma.done [#allocation3], 512
    $region57: #{oracle_forward.1} parent=1 // pred_fallthru
      _
    %v60 = vld [vmem:[%s0] sm:$0xff]
    %v61 = vld [vmem:[%s1] sm:$0xff]
    %v62 = vld [vmem:[%s2] sm:$0xff]
    %v63 = vld [vmem:[%s4] sm:$0xff]
    %v64 = vld [vmem:[%s4 + $0x8] sm:$0xff]
    %v65 = vld [vmem:[%s5] sm:$0xff]
    %v66 = vld [vmem:[%s5 + $0x8] sm:$0xff]
    %v67 = vld [vmem:[%s5 + $0x10] sm:$0xff]
    %v68 = vld [vmem:[%s5 + $0x18] sm:$0xff]
    %v69 = vld [vmem:[%s6] sm:$0xff]
    %v70 = vld [vmem:[%s7] sm:$0xff]
    %v71 = vld [vmem:[%s7 + $0x8] sm:$0xff]
    %v72 = vld [vmem:[%s7 + $0x10] sm:$0xff]
    %v73 = vld [vmem:[%s7 + $0x18] sm:$0xff]
    %v74 = vld [vmem:[%s8] sm:$0xff]
    %v75 = vld [vmem:[%s8 + $0x8] sm:$0xff]
    %v76 = vld [vmem:[%s8 + $0x10] sm:$0xff]
    %v77 = vld [vmem:[%s8 + $0x18] sm:$0xff]
    %v78 = vld [vmem:[#allocation2] sm:$0xff]
    %v79 = vld [vmem:[#allocation2 + $0x8] sm:$0xff]
    %v80 = vld [vmem:[#allocation2 + $0x10] sm:$0xff]
    %v81 = vld [vmem:[#allocation2 + $0x18] sm:$0xff]
    %v82 = vld [vmem:[%s10] sm:$0xff]
    %v83 = vld [vmem:[%s11] sm:$0xff]
    %v84 = vld [vmem:[%s11 + $0x8] sm:$0xff]
    %v85 = vld [vmem:[%s11 + $0x10] sm:$0xff]
    %v86 = vld [vmem:[%s11 + $0x18] sm:$0xff]
    %v87 = vld [vmem:[%s12] sm:$0xff]
    %vm88 = vcmask 261120
    %v90 = vsel %vm88, %v61, 0
    %92 = vmatpush.msra.mxu0 0.0
    %93 = vmatpush.msra.mxu0 0.0
    %94 = vmatpush.msra.mxu0 0.0
    %95 = vmatpush.msra.mxu0 0.0
    %96 = vmatpush.msra.mxu0 0.0
    %97 = vmatpush.msra.mxu0 0.0
    %98 = vmatpush.msra.mxu0 0.0
    %99 = vmatpush.msra.mxu0 0.0
    %100 = vmatpush.msra.mxu0 0.0
    %101 = vmatpush.msra.mxu0 0.0
    %102 = vmatpush.msra.mxu0 0.0
    %103 = vmatpush.msra.mxu0 0.0
    %104 = vmatpush.msra.mxu0 %v77
    %105 = vmatpush.msra.mxu0 %v76
    %106 = vmatpush.msra.mxu0 %v75
    %107 = vmatpush.msra.mxu0 %v74
    %108 = vmatmul.f32.gmra.mxu0 %v90
    %v109 = vpop.f32.mrf.mxu0
    %v110 = vadd.f32 0.0, %v109
    %111 = vdwg.mxu0
    %v113 = vsel %vm88, %v60, 0
    %115 = vmatpush.msra.mxu0 0.0
    %116 = vmatpush.msra.mxu0 0.0
    %117 = vmatpush.msra.mxu0 0.0
    %118 = vmatpush.msra.mxu0 0.0
    %119 = vmatpush.msra.mxu0 0.0
    %120 = vmatpush.msra.mxu0 0.0
    %121 = vmatpush.msra.mxu0 0.0
    %122 = vmatpush.msra.mxu0 0.0
    %123 = vmatpush.msra.mxu0 0.0
    %124 = vmatpush.msra.mxu0 0.0
    %125 = vmatpush.msra.mxu0 0.0
    %126 = vmatpush.msra.mxu0 0.0
    %127 = vmatpush.msra.mxu0 %v73
    %128 = vmatpush.msra.mxu0 %v72
    %129 = vmatpush.msra.mxu0 %v71
    %130 = vmatpush.msra.mxu0 %v70
    %131 = vmatmul.f32.gmra.mxu0 %v113
    %v132 = vpop.f32.mrf.mxu0
    %v133 = vadd.f32 %v110, %v132
    %134 = vdwg.mxu0
    %v135 = vadd.f32 %v133, %v62
    %v136 = vmax.f32 %v135, 0.0
    %v138 = vsel %vm88, %v136, 0
    %140 = vmatpush.msra.mxu0 0.0
    %141 = vmatpush.msra.mxu0 0.0
    %142 = vmatpush.msra.mxu0 0.0
    %143 = vmatpush.msra.mxu0 0.0
    %144 = vmatpush.msra.mxu0 0.0
    %145 = vmatpush.msra.mxu0 0.0
    %146 = vmatpush.msra.mxu0 0.0
    %147 = vmatpush.msra.mxu0 0.0
    %148 = vmatpush.msra.mxu0 0.0
    %149 = vmatpush.msra.mxu0 0.0
    %150 = vmatpush.msra.mxu0 0.0
    %151 = vmatpush.msra.mxu0 0.0
    %152 = vmatpush.msra.mxu0 %v81
    %153 = vmatpush.msra.mxu0 %v80
    %154 = vmatpush.msra.mxu0 %v79
    %155 = vmatpush.msra.mxu0 %v78
    %156 = vmatmul.f32.gmra.mxu0 %v138
    %v157 = vpop.f32.mrf.mxu0
    %v158 = vadd.f32 %v82, %v157
    %159 = vdwg.mxu0
    %v160 = vmax.f32 %v158, 0.0
    %v162 = vsel %vm88, %v160, 0
    %164 = vmatpush.msra.mxu0 0.0
    %165 = vmatpush.msra.mxu0 0.0
    %166 = vmatpush.msra.mxu0 0.0
    %167 = vmatpush.msra.mxu0 0.0
    %168 = vmatpush.msra.mxu0 0.0
    %169 = vmatpush.msra.mxu0 0.0
    %170 = vmatpush.msra.mxu0 0.0
    %171 = vmatpush.msra.mxu0 0.0
    %172 = vmatpush.msra.mxu0 0.0
    %173 = vmatpush.msra.mxu0 0.0
    %174 = vmatpush.msra.mxu0 0.0
    %175 = vmatpush.msra.mxu0 0.0
    %176 = vmatpush.msra.mxu0 %v86
    %177 = vmatpush.msra.mxu0 %v85
    %178 = vmatpush.msra.mxu0 %v84
    %179 = vmatpush.msra.mxu0 %v83
    %180 = vmatmul.f32.gmra.mxu0 %v162
    %v181 = vpop.f32.mrf.mxu0
    %v182 = vadd.f32 %v87, %v181
    %183 = vdwg.mxu0
    %v184 = vld [vmem:[%s3] sm:$0xff]
    %v185 = vadd.f32 %v182, %v184
    %v186 = vmul.f32 %v185, 5.0
    %vm187 = vcmask 130048
    %v188 = vsel %vm187, %v186, -inf
    %189 = vmax.xlane.f32.xlu0 %v188
    %v190 = vpop.xlane.xlu0 %189
    %v191 = vsub.f32 %v186, %v190
    %v192 = vmul.f32 %v191, 1.442695
    %v193 = vpow.pop %v192
    %v194 = vsel %vm187, %v193, 0.0
    %195 = vadd.xlane.f32.xlu0 %v194
    %v196 = vpop.xlane.xlu0 %195
    %v197 = vrcp.pop %v196
    %v198 = vmul.f32 %v196, %v197
    %v199 = vsub.f32 1.0, %v198
    %v200 = vmul.f32 %v197, %v199
    %v201 = vadd.f32 %v197, %v200
    %vm202 = vweird.f32 %v196
    %vm203 = vweird.f32 %v197
    %vm204 = vmor %vm202, %vm203
    %v205 = vsel %vm204, %v197, %v201
    %v206 = vand.u32 2147483647, %v196
    %vm207 = vcmp.eq.f32.partialorder %v206, 8.507059e+37
    %v208 = vand.u32 %v196, 2147483648
    %v209 = vor.u32 1.1754944e-38, %v208
    %v210 = vsel %vm207, %v209, %v205
    %v211 = vmul.f32 %v193, %v210
    %212 = vst.msk [vmem:[%s13] sm:$0xff] %vm187, %v211
    %213 = vmatpush.msra.mxu0 0.0
    %214 = vmatpush.msra.mxu0 0.0
    %215 = vmatpush.msra.mxu0 0.0
    %216 = vmatpush.msra.mxu0 0.0
    %217 = vmatpush.msra.mxu0 0.0
    %218 = vmatpush.msra.mxu0 0.0
    %219 = vmatpush.msra.mxu0 0.0
    %220 = vmatpush.msra.mxu0 0.0
    %221 = vmatpush.msra.mxu0 0.0
    %222 = vmatpush.msra.mxu0 0.0
    %223 = vmatpush.msra.mxu0 0.0
    %224 = vmatpush.msra.mxu0 0.0
    %225 = vmatpush.msra.mxu0 %v68
    %226 = vmatpush.msra.mxu0 %v67
    %227 = vmatpush.msra.mxu0 %v66
    %228 = vmatpush.msra.mxu0 %v65
    %229 = vmatmul.f32.gmra.mxu0 %v113
    %v230 = vpop.f32.mrf.mxu0
    %v231 = vadd.f32 0.0, %v230
    %232 = vdwg.mxu0
    %v234 = vsel %vm187, %v211, 0
    %236 = vmatpush.msra.mxu0 0.0
    %237 = vmatpush.msra.mxu0 0.0
    %238 = vmatpush.msra.mxu0 0.0
    %239 = vmatpush.msra.mxu0 0.0
    %240 = vmatpush.msra.mxu0 0.0
    %241 = vmatpush.msra.mxu0 0.0
    %242 = vmatpush.msra.mxu0 0.0
    %243 = vmatpush.msra.mxu0 0.0
    %244 = vmatpush.msra.mxu0 0.0
    %245 = vmatpush.msra.mxu0 0.0
    %246 = vmatpush.msra.mxu0 0.0
    %247 = vmatpush.msra.mxu0 0.0
    %248 = vmatpush.msra.mxu0 0.0
    %249 = vmatpush.msra.mxu0 0.0
    %250 = vmatpush.msra.mxu0 %v64
    %251 = vmatpush.msra.mxu0 %v63
    %252 = vmatmul.f32.gmra.mxu0 %v234
    %v253 = vpop.f32.mrf.mxu0
    %v254 = vadd.f32 %v231, %v253
    %255 = vdwg.mxu0
    %v256 = vadd.f32 %v254, %v69
    %v257 = vxor.u32 %v256, 2147483648
    %v258 = vmul.f32 %v257, 1.442695
    %v259 = vpow.pop %v258
    %v260 = vadd.f32 %v259, 1.0
    %v261 = vrcp.pop %v260
    %v262 = vmul.f32 %v260, %v261
    %v263 = vsub.f32 1.0, %v262
    %v264 = vmul.f32 %v261, %v263
    %v265 = vadd.f32 %v261, %v264
    %vm266 = vweird.f32 %v260
    %vm267 = vweird.f32 %v261
    %vm268 = vmor %vm266, %vm267
    %v269 = vsel %vm268, %v261, %v265
    %v270 = vand.u32 2147483647, %v260
    %vm271 = vcmp.eq.f32.partialorder %v270, 8.507059e+37
    %v272 = vand.u32 %v260, 2147483648
    %v273 = vor.u32 1.1754944e-38, %v272
    %v274 = vsel %vm271, %v273, %v269
    %v275 = vmul.f32 1.0, %v274
    %v276 = vtanh.pop %v256
    %277 = vrot.lane.b32.xlu0 %v61, 32
    %v278 = vpop.permute.xlu0 %277
    %v280 = vmul.f32 %v275, %v278
    %282 = vrot.lane.b32.xlu0 %v276, 64
    %v283 = vpop.permute.xlu0 %282
    %v285 = vmul.f32 %v275, %v283
    %287 = vrot.lane.b32.xlu0 %v285, 32
    %v288 = vpop.permute.xlu0 %287
    %v290 = vadd.f32 %v280, %v288
    %v291 = vtanh.pop %v290
    %293 = vrot.lane.b32.xlu0 %v291, 64
    %v294 = vpop.permute.xlu0 %293
    %v296 = vmul.f32 %v275, %v294
    %298 = vrot.lane.b32.xlu0 %v290, 96
    %v299 = vpop.permute.xlu0 %298
    %v300 = vsel %vm88, %v299, 0
    %302 = vmatpush.msra.mxu0 0.0
    %303 = vmatpush.msra.mxu0 0.0
    %304 = vmatpush.msra.mxu0 0.0
    %305 = vmatpush.msra.mxu0 0.0
    %306 = vmatpush.msra.mxu0 0.0
    %307 = vmatpush.msra.mxu0 0.0
    %308 = vmatpush.msra.mxu0 0.0
    %309 = vmatpush.msra.mxu0 0.0
    %310 = vmatpush.msra.mxu0 0.0
    %311 = vmatpush.msra.mxu0 0.0
    %312 = vmatpush.msra.mxu0 0.0
    %313 = vmatpush.msra.mxu0 0.0
    %314 = vmatpush.msra.mxu0 %v77
    %315 = vmatpush.msra.mxu0 %v76
    %316 = vmatpush.msra.mxu0 %v75
    %317 = vmatpush.msra.mxu0 %v74
    %318 = vmatmul.f32.gmra.mxu0 %v300
    %v319 = vpop.f32.mrf.mxu0
    %v320 = vadd.f32 0.0, %v319
    %321 = vdwg.mxu0
    %323 = vrot.lane.b32.xlu0 %v296, 32
    %v324 = vpop.permute.xlu0 %323
    %v325 = vsel %vm88, %v324, 0
    %327 = vmatpush.msra.mxu0 0.0
    %328 = vmatpush.msra.mxu0 0.0
    %329 = vmatpush.msra.mxu0 0.0
    %330 = vmatpush.msra.mxu0 0.0
    %331 = vmatpush.msra.mxu0 0.0
    %332 = vmatpush.msra.mxu0 0.0
    %333 = vmatpush.msra.mxu0 0.0
    %334 = vmatpush.msra.mxu0 0.0
    %335 = vmatpush.msra.mxu0 0.0
    %336 = vmatpush.msra.mxu0 0.0
    %337 = vmatpush.msra.mxu0 0.0
    %338 = vmatpush.msra.mxu0 0.0
    %339 = vmatpush.msra.mxu0 %v73
    %340 = vmatpush.msra.mxu0 %v72
    %341 = vmatpush.msra.mxu0 %v71
    %342 = vmatpush.msra.mxu0 %v70
    %343 = vmatmul.f32.gmra.mxu0 %v325
    %v344 = vpop.f32.mrf.mxu0
    %v345 = vadd.f32 %v320, %v344
    %346 = vdwg.mxu0
    %v347 = vadd.f32 %v345, %v62
    %v348 = vmax.f32 %v347, 0.0
    %v350 = vsel %vm88, %v348, 0
    %352 = vmatpush.msra.mxu0 0.0
    %353 = vmatpush.msra.mxu0 0.0
    %354 = vmatpush.msra.mxu0 0.0
    %355 = vmatpush.msra.mxu0 0.0
    %356 = vmatpush.msra.mxu0 0.0
    %357 = vmatpush.msra.mxu0 0.0
    %358 = vmatpush.msra.mxu0 0.0
    %359 = vmatpush.msra.mxu0 0.0
    %360 = vmatpush.msra.mxu0 0.0
    %361 = vmatpush.msra.mxu0 0.0
    %362 = vmatpush.msra.mxu0 0.0
    %363 = vmatpush.msra.mxu0 0.0
    %364 = vmatpush.msra.mxu0 %v81
    %365 = vmatpush.msra.mxu0 %v80
    %366 = vmatpush.msra.mxu0 %v79
    %367 = vmatpush.msra.mxu0 %v78
    %368 = vmatmul.f32.gmra.mxu0 %v350
    %v369 = vpop.f32.mrf.mxu0
    %v370 = vadd.f32 %v82, %v369
    %371 = vdwg.mxu0
    %v372 = vmax.f32 %v370, 0.0
    %v374 = vsel %vm88, %v372, 0
    %376 = vmatpush.msra.mxu0 0.0
    %377 = vmatpush.msra.mxu0 0.0
    %378 = vmatpush.msra.mxu0 0.0
    %379 = vmatpush.msra.mxu0 0.0
    %380 = vmatpush.msra.mxu0 0.0
    %381 = vmatpush.msra.mxu0 0.0
    %382 = vmatpush.msra.mxu0 0.0
    %383 = vmatpush.msra.mxu0 0.0
    %384 = vmatpush.msra.mxu0 0.0
    %385 = vmatpush.msra.mxu0 0.0
    %386 = vmatpush.msra.mxu0 0.0
    %387 = vmatpush.msra.mxu0 0.0
    %388 = vmatpush.msra.mxu0 %v86
    %389 = vmatpush.msra.mxu0 %v85
    %390 = vmatpush.msra.mxu0 %v84
    %391 = vmatpush.msra.mxu0 %v83
    %392 = vmatmul.f32.gmra.mxu0 %v374
    %v393 = vpop.f32.mrf.mxu0
    %v394 = vadd.f32 %v87, %v393
    %395 = vdwg.mxu0
    %s396 = scalar_lea.vmem %s3, 8
    %v397 = vld [vmem:[%s396] sm:$0xff]
    %v398 = vadd.f32 %v394, %v397
    %v399 = vmul.f32 %v398, 5.0
    %v400 = vsel %vm187, %v399, -inf
    %401 = vmax.xlane.f32.xlu0 %v400
    %v402 = vpop.xlane.xlu0 %401
    %v403 = vsub.f32 %v399, %v402
    %v404 = vmul.f32 %v403, 1.442695
    %v405 = vpow.pop %v404
    %v406 = vsel %vm187, %v405, 0.0
    %407 = vadd.xlane.f32.xlu0 %v406
    %v408 = vpop.xlane.xlu0 %407
    %v409 = vrcp.pop %v408
    %v410 = vmul.f32 %v408, %v409
    %v411 = vsub.f32 1.0, %v410
    %v412 = vmul.f32 %v409, %v411
    %v413 = vadd.f32 %v409, %v412
    %vm414 = vweird.f32 %v408
    %vm415 = vweird.f32 %v409
    %vm416 = vmor %vm414, %vm415
    %v417 = vsel %vm416, %v409, %v413
    %v418 = vand.u32 2147483647, %v408
    %vm419 = vcmp.eq.f32.partialorder %v418, 8.507059e+37
    %v420 = vand.u32 %v408, 2147483648
    %v421 = vor.u32 1.1754944e-38, %v420
    %v422 = vsel %vm419, %v421, %v417
    %v423 = vmul.f32 %v405, %v422
    %s424 = scalar_lea.vmem %s13, 8
    %425 = vst.msk [vmem:[%s424] sm:$0xff] %vm187, %v423
    %426 = vmatpush.msra.mxu0 0.0
    %427 = vmatpush.msra.mxu0 0.0
    %428 = vmatpush.msra.mxu0 0.0
    %429 = vmatpush.msra.mxu0 0.0
    %430 = vmatpush.msra.mxu0 0.0
    %431 = vmatpush.msra.mxu0 0.0
    %432 = vmatpush.msra.mxu0 0.0
    %433 = vmatpush.msra.mxu0 0.0
    %434 = vmatpush.msra.mxu0 0.0
    %435 = vmatpush.msra.mxu0 0.0
    %436 = vmatpush.msra.mxu0 0.0
    %437 = vmatpush.msra.mxu0 0.0
    %438 = vmatpush.msra.mxu0 %v68
    %439 = vmatpush.msra.mxu0 %v67
    %440 = vmatpush.msra.mxu0 %v66
    %441 = vmatpush.msra.mxu0 %v65
    %442 = vmatmul.f32.gmra.mxu0 %v325
    %v443 = vpop.f32.mrf.mxu0
    %v444 = vadd.f32 0.0, %v443
    %445 = vdwg.mxu0
    %v447 = vsel %vm187, %v423, 0
    %449 = vmatpush.msra.mxu0 0.0
    %450 = vmatpush.msra.mxu0 0.0
    %451 = vmatpush.msra.mxu0 0.0
    %452 = vmatpush.msra.mxu0 0.0
    %453 = vmatpush.msra.mxu0 0.0
    %454 = vmatpush.msra.mxu0 0.0
    %455 = vmatpush.msra.mxu0 0.0
    %456 = vmatpush.msra.mxu0 0.0
    %457 = vmatpush.msra.mxu0 0.0
    %458 = vmatpush.msra.mxu0 0.0
    %459 = vmatpush.msra.mxu0 0.0
    %460 = vmatpush.msra.mxu0 0.0
    %461 = vmatpush.msra.mxu0 0.0
    %462 = vmatpush.msra.mxu0 0.0
    %463 = vmatpush.msra.mxu0 %v64
    %464 = vmatpush.msra.mxu0 %v63
    %465 = vmatmul.f32.gmra.mxu0 %v447
    %v466 = vpop.f32.mrf.mxu0
    %v467 = vadd.f32 %v444, %v466
    %468 = vdwg.mxu0
    %v469 = vadd.f32 %v467, %v69
    %v470 = vxor.u32 %v469, 2147483648
    %v471 = vmul.f32 %v470, 1.442695
    %v472 = vpow.pop %v471
    %v473 = vadd.f32 %v472, 1.0
    %v474 = vrcp.pop %v473
    %v475 = vmul.f32 %v473, %v474
    %v476 = vsub.f32 1.0, %v475
    %v477 = vmul.f32 %v474, %v476
    %v478 = vadd.f32 %v474, %v477
    %vm479 = vweird.f32 %v473
    %vm480 = vweird.f32 %v474
    %vm481 = vmor %vm479, %vm480
    %v482 = vsel %vm481, %v474, %v478
    %v483 = vand.u32 2147483647, %v473
    %vm484 = vcmp.eq.f32.partialorder %v483, 8.507059e+37
    %v485 = vand.u32 %v473, 2147483648
    %v486 = vor.u32 1.1754944e-38, %v485
    %v487 = vsel %vm484, %v486, %v482
    %v488 = vmul.f32 1.0, %v487
    %v489 = vtanh.pop %v469
    %v490 = vmul.f32 %v488, %v290
    %492 = vrot.lane.b32.xlu0 %v489, 64
    %v493 = vpop.permute.xlu0 %492
    %v495 = vmul.f32 %v488, %v493
    %497 = vrot.lane.b32.xlu0 %v495, 32
    %v498 = vpop.permute.xlu0 %497
    %v500 = vadd.f32 %v490, %v498
    %v501 = vtanh.pop %v500
    %503 = vrot.lane.b32.xlu0 %v501, 64
    %v504 = vpop.permute.xlu0 %503
    %v506 = vmul.f32 %v488, %v504
    %508 = vrot.lane.b32.xlu0 %v500, 96
    %v509 = vpop.permute.xlu0 %508
    %v510 = vsel %vm88, %v509, 0
    %512 = vmatpush.msra.mxu0 0.0
    %513 = vmatpush.msra.mxu0 0.0
    %514 = vmatpush.msra.mxu0 0.0
    %515 = vmatpush.msra.mxu0 0.0
    %516 = vmatpush.msra.mxu0 0.0
    %517 = vmatpush.msra.mxu0 0.0
    %518 = vmatpush.msra.mxu0 0.0
    %519 = vmatpush.msra.mxu0 0.0
    %520 = vmatpush.msra.mxu0 0.0
    %521 = vmatpush.msra.mxu0 0.0
    %522 = vmatpush.msra.mxu0 0.0
    %523 = vmatpush.msra.mxu0 0.0
    %524 = vmatpush.msra.mxu0 %v77
    %525 = vmatpush.msra.mxu0 %v76
    %526 = vmatpush.msra.mxu0 %v75
    %527 = vmatpush.msra.mxu0 %v74
    %528 = vmatmul.f32.gmra.mxu0 %v510
    %v529 = vpop.f32.mrf.mxu0
    %v530 = vadd.f32 0.0, %v529
    %531 = vdwg.mxu0
    %533 = vrot.lane.b32.xlu0 %v506, 32
    %v534 = vpop.permute.xlu0 %533
    %v535 = vsel %vm88, %v534, 0
    %537 = vmatpush.msra.mxu0 0.0
    %538 = vmatpush.msra.mxu0 0.0
    %539 = vmatpush.msra.mxu0 0.0
    %540 = vmatpush.msra.mxu0 0.0
    %541 = vmatpush.msra.mxu0 0.0
    %542 = vmatpush.msra.mxu0 0.0
    %543 = vmatpush.msra.mxu0 0.0
    %544 = vmatpush.msra.mxu0 0.0
    %545 = vmatpush.msra.mxu0 0.0
    %546 = vmatpush.msra.mxu0 0.0
    %547 = vmatpush.msra.mxu0 0.0
    %548 = vmatpush.msra.mxu0 0.0
    %549 = vmatpush.msra.mxu0 %v73
    %550 = vmatpush.msra.mxu0 %v72
    %551 = vmatpush.msra.mxu0 %v71
    %552 = vmatpush.msra.mxu0 %v70
    %553 = vmatmul.f32.gmra.mxu0 %v535
    %v554 = vpop.f32.mrf.mxu0
    %v555 = vadd.f32 %v530, %v554
    %556 = vdwg.mxu0
    %v557 = vadd.f32 %v555, %v62
    %v558 = vmax.f32 %v557, 0.0
    %v560 = vsel %vm88, %v558, 0
    %562 = vmatpush.msra.mxu0 0.0
    %563 = vmatpush.msra.mxu0 0.0
    %564 = vmatpush.msra.mxu0 0.0
    %565 = vmatpush.msra.mxu0 0.0
    %566 = vmatpush.msra.mxu0 0.0
    %567 = vmatpush.msra.mxu0 0.0
    %568 = vmatpush.msra.mxu0 0.0
    %569 = vmatpush.msra.mxu0 0.0
    %570 = vmatpush.msra.mxu0 0.0
    %571 = vmatpush.msra.mxu0 0.0
    %572 = vmatpush.msra.mxu0 0.0
    %573 = vmatpush.msra.mxu0 0.0
    %574 = vmatpush.msra.mxu0 %v81
    %575 = vmatpush.msra.mxu0 %v80
    %576 = vmatpush.msra.mxu0 %v79
    %577 = vmatpush.msra.mxu0 %v78
    %578 = vmatmul.f32.gmra.mxu0 %v560
    %v579 = vpop.f32.mrf.mxu0
    %v580 = vadd.f32 %v82, %v579
    %581 = vdwg.mxu0
    %v582 = vmax.f32 %v580, 0.0
    %v584 = vsel %vm88, %v582, 0
    %586 = vmatpush.msra.mxu0 0.0
    %587 = vmatpush.msra.mxu0 0.0
    %588 = vmatpush.msra.mxu0 0.0
    %589 = vmatpush.msra.mxu0 0.0
    %590 = vmatpush.msra.mxu0 0.0
    %591 = vmatpush.msra.mxu0 0.0
    %592 = vmatpush.msra.mxu0 0.0
    %593 = vmatpush.msra.mxu0 0.0
    %594 = vmatpush.msra.mxu0 0.0
    %595 = vmatpush.msra.mxu0 0.0
    %596 = vmatpush.msra.mxu0 0.0
    %597 = vmatpush.msra.mxu0 0.0
    %598 = vmatpush.msra.mxu0 %v86
    %599 = vmatpush.msra.mxu0 %v85
    %600 = vmatpush.msra.mxu0 %v84
    %601 = vmatpush.msra.mxu0 %v83
    %602 = vmatmul.f32.gmra.mxu0 %v584
    %v603 = vpop.f32.mrf.mxu0
    %v604 = vadd.f32 %v87, %v603
    %605 = vdwg.mxu0
    %s606 = scalar_lea.vmem %s3, 16
    %v607 = vld [vmem:[%s606] sm:$0xff]
    %v608 = vadd.f32 %v604, %v607
    %v609 = vmul.f32 %v608, 5.0
    %v610 = vsel %vm187, %v609, -inf
    %611 = vmax.xlane.f32.xlu0 %v610
    %v612 = vpop.xlane.xlu0 %611
    %v613 = vsub.f32 %v609, %v612
    %v614 = vmul.f32 %v613, 1.442695
    %v615 = vpow.pop %v614
    %v616 = vsel %vm187, %v615, 0.0
    %617 = vadd.xlane.f32.xlu0 %v616
    %v618 = vpop.xlane.xlu0 %617
    %v619 = vrcp.pop %v618
    %v620 = vmul.f32 %v618, %v619
    %v621 = vsub.f32 1.0, %v620
    %v622 = vmul.f32 %v619, %v621
    %v623 = vadd.f32 %v619, %v622
    %vm624 = vweird.f32 %v618
    %vm625 = vweird.f32 %v619
    %vm626 = vmor %vm624, %vm625
    %v627 = vsel %vm626, %v619, %v623
    %v628 = vand.u32 2147483647, %v618
    %vm629 = vcmp.eq.f32.partialorder %v628, 8.507059e+37
    %v630 = vand.u32 %v618, 2147483648
    %v631 = vor.u32 1.1754944e-38, %v630
    %v632 = vsel %vm629, %v631, %v627
    %v633 = vmul.f32 %v615, %v632
    %s634 = scalar_lea.vmem %s13, 16
    %635 = vst.msk [vmem:[%s634] sm:$0xff] %vm187, %v633
    %636 = vmatpush.msra.mxu0 0.0
    %637 = vmatpush.msra.mxu0 0.0
    %638 = vmatpush.msra.mxu0 0.0
    %639 = vmatpush.msra.mxu0 0.0
    %640 = vmatpush.msra.mxu0 0.0
    %641 = vmatpush.msra.mxu0 0.0
    %642 = vmatpush.msra.mxu0 0.0
    %643 = vmatpush.msra.mxu0 0.0
    %644 = vmatpush.msra.mxu0 0.0
    %645 = vmatpush.msra.mxu0 0.0
    %646 = vmatpush.msra.mxu0 0.0
    %647 = vmatpush.msra.mxu0 0.0
    %648 = vmatpush.msra.mxu0 %v68
    %649 = vmatpush.msra.mxu0 %v67
    %650 = vmatpush.msra.mxu0 %v66
    %651 = vmatpush.msra.mxu0 %v65
    %652 = vmatmul.f32.gmra.mxu0 %v535
    %v653 = vpop.f32.mrf.mxu0
    %v654 = vadd.f32 0.0, %v653
    %655 = vdwg.mxu0
    %v657 = vsel %vm187, %v633, 0
    %659 = vmatpush.msra.mxu0 0.0
    %660 = vmatpush.msra.mxu0 0.0
    %661 = vmatpush.msra.mxu0 0.0
    %662 = vmatpush.msra.mxu0 0.0
    %663 = vmatpush.msra.mxu0 0.0
    %664 = vmatpush.msra.mxu0 0.0
    %665 = vmatpush.msra.mxu0 0.0
    %666 = vmatpush.msra.mxu0 0.0
    %667 = vmatpush.msra.mxu0 0.0
    %668 = vmatpush.msra.mxu0 0.0
    %669 = vmatpush.msra.mxu0 0.0
    %670 = vmatpush.msra.mxu0 0.0
    %671 = vmatpush.msra.mxu0 0.0
    %672 = vmatpush.msra.mxu0 0.0
    %673 = vmatpush.msra.mxu0 %v64
    %674 = vmatpush.msra.mxu0 %v63
    %675 = vmatmul.f32.gmra.mxu0 %v657
    %v676 = vpop.f32.mrf.mxu0
    %v677 = vadd.f32 %v654, %v676
    %678 = vdwg.mxu0
    %v679 = vadd.f32 %v677, %v69
    %v680 = vxor.u32 %v679, 2147483648
    %v681 = vmul.f32 %v680, 1.442695
    %v682 = vpow.pop %v681
    %v683 = vadd.f32 %v682, 1.0
    %v684 = vrcp.pop %v683
    %v685 = vmul.f32 %v683, %v684
    %v686 = vsub.f32 1.0, %v685
    %v687 = vmul.f32 %v684, %v686
    %v688 = vadd.f32 %v684, %v687
    %vm689 = vweird.f32 %v683
    %vm690 = vweird.f32 %v684
    %vm691 = vmor %vm689, %vm690
    %v692 = vsel %vm691, %v684, %v688
    %v693 = vand.u32 2147483647, %v683
    %vm694 = vcmp.eq.f32.partialorder %v693, 8.507059e+37
    %v695 = vand.u32 %v683, 2147483648
    %v696 = vor.u32 1.1754944e-38, %v695
    %v697 = vsel %vm694, %v696, %v692
    %v698 = vmul.f32 1.0, %v697
    %v699 = vtanh.pop %v679
    %v700 = vmul.f32 %v698, %v500
    %702 = vrot.lane.b32.xlu0 %v699, 64
    %v703 = vpop.permute.xlu0 %702
    %v705 = vmul.f32 %v698, %v703
    %707 = vrot.lane.b32.xlu0 %v705, 32
    %v708 = vpop.permute.xlu0 %707
    %v710 = vadd.f32 %v700, %v708
    %v711 = vtanh.pop %v710
    %713 = vrot.lane.b32.xlu0 %v711, 64
    %v714 = vpop.permute.xlu0 %713
    %v716 = vmul.f32 %v698, %v714
    %718 = vrot.lane.b32.xlu0 %v710, 96
    %v719 = vpop.permute.xlu0 %718
    %v720 = vsel %vm88, %v719, 0
    %722 = vmatpush.msra.mxu0 0.0
    %723 = vmatpush.msra.mxu0 0.0
    %724 = vmatpush.msra.mxu0 0.0
    %725 = vmatpush.msra.mxu0 0.0
    %726 = vmatpush.msra.mxu0 0.0
    %727 = vmatpush.msra.mxu0 0.0
    %728 = vmatpush.msra.mxu0 0.0
    %729 = vmatpush.msra.mxu0 0.0
    %730 = vmatpush.msra.mxu0 0.0
    %731 = vmatpush.msra.mxu0 0.0
    %732 = vmatpush.msra.mxu0 0.0
    %733 = vmatpush.msra.mxu0 0.0
    %734 = vmatpush.msra.mxu0 %v77
    %735 = vmatpush.msra.mxu0 %v76
    %736 = vmatpush.msra.mxu0 %v75
    %737 = vmatpush.msra.mxu0 %v74
    %738 = vmatmul.f32.gmra.mxu0 %v720
    %v739 = vpop.f32.mrf.mxu0
    %v740 = vadd.f32 0.0, %v739
    %741 = vdwg.mxu0
    %743 = vrot.lane.b32.xlu0 %v716, 32
    %v744 = vpop.permute.xlu0 %743
    %v745 = vsel %vm88, %v744, 0
    %747 = vmatpush.msra.mxu0 0.0
    %748 = vmatpush.msra.mxu0 0.0
    %749 = vmatpush.msra.mxu0 0.0
    %750 = vmatpush.msra.mxu0 0.0
    %751 = vmatpush.msra.mxu0 0.0
    %752 = vmatpush.msra.mxu0 0.0
    %753 = vmatpush.msra.mxu0 0.0
    %754 = vmatpush.msra.mxu0 0.0
    %755 = vmatpush.msra.mxu0 0.0
    %756 = vmatpush.msra.mxu0 0.0
    %757 = vmatpush.msra.mxu0 0.0
    %758 = vmatpush.msra.mxu0 0.0
    %759 = vmatpush.msra.mxu0 %v73
    %760 = vmatpush.msra.mxu0 %v72
    %761 = vmatpush.msra.mxu0 %v71
    %762 = vmatpush.msra.mxu0 %v70
    %763 = vmatmul.f32.gmra.mxu0 %v745
    %v764 = vpop.f32.mrf.mxu0
    %v765 = vadd.f32 %v740, %v764
    %766 = vdwg.mxu0
    %v767 = vadd.f32 %v765, %v62
    %v768 = vmax.f32 %v767, 0.0
    %v770 = vsel %vm88, %v768, 0
    %772 = vmatpush.msra.mxu0 0.0
    %773 = vmatpush.msra.mxu0 0.0
    %774 = vmatpush.msra.mxu0 0.0
    %775 = vmatpush.msra.mxu0 0.0
    %776 = vmatpush.msra.mxu0 0.0
    %777 = vmatpush.msra.mxu0 0.0
    %778 = vmatpush.msra.mxu0 0.0
    %779 = vmatpush.msra.mxu0 0.0
    %780 = vmatpush.msra.mxu0 0.0
    %781 = vmatpush.msra.mxu0 0.0
    %782 = vmatpush.msra.mxu0 0.0
    %783 = vmatpush.msra.mxu0 0.0
    %784 = vmatpush.msra.mxu0 %v81
    %785 = vmatpush.msra.mxu0 %v80
    %786 = vmatpush.msra.mxu0 %v79
    %787 = vmatpush.msra.mxu0 %v78
    %788 = vmatmul.f32.gmra.mxu0 %v770
    %v789 = vpop.f32.mrf.mxu0
    %v790 = vadd.f32 %v82, %v789
    %791 = vdwg.mxu0
    %v792 = vmax.f32 %v790, 0.0
    %v794 = vsel %vm88, %v792, 0
    %796 = vmatpush.msra.mxu0 0.0
    %797 = vmatpush.msra.mxu0 0.0
    %798 = vmatpush.msra.mxu0 0.0
    %799 = vmatpush.msra.mxu0 0.0
    %800 = vmatpush.msra.mxu0 0.0
    %801 = vmatpush.msra.mxu0 0.0
    %802 = vmatpush.msra.mxu0 0.0
    %803 = vmatpush.msra.mxu0 0.0
    %804 = vmatpush.msra.mxu0 0.0
    %805 = vmatpush.msra.mxu0 0.0
    %806 = vmatpush.msra.mxu0 0.0
    %807 = vmatpush.msra.mxu0 0.0
    %808 = vmatpush.msra.mxu0 %v86
    %809 = vmatpush.msra.mxu0 %v85
    %810 = vmatpush.msra.mxu0 %v84
    %811 = vmatpush.msra.mxu0 %v83
    %812 = vmatmul.f32.gmra.mxu0 %v794
    %v813 = vpop.f32.mrf.mxu0
    %v814 = vadd.f32 %v87, %v813
    %815 = vdwg.mxu0
    %s816 = scalar_lea.vmem %s3, 24
    %v817 = vld [vmem:[%s816] sm:$0xff]
    %v818 = vadd.f32 %v814, %v817
    %v819 = vmul.f32 %v818, 5.0
    %v820 = vsel %vm187, %v819, -inf
    %821 = vmax.xlane.f32.xlu0 %v820
    %v822 = vpop.xlane.xlu0 %821
    %v823 = vsub.f32 %v819, %v822
    %v824 = vmul.f32 %v823, 1.442695
    %v825 = vpow.pop %v824
    %v826 = vsel %vm187, %v825, 0.0
    %827 = vadd.xlane.f32.xlu0 %v826
    %v828 = vpop.xlane.xlu0 %827
    %v829 = vrcp.pop %v828
    %v830 = vmul.f32 %v828, %v829
    %v831 = vsub.f32 1.0, %v830
    %v832 = vmul.f32 %v829, %v831
    %v833 = vadd.f32 %v829, %v832
    %vm834 = vweird.f32 %v828
    %vm835 = vweird.f32 %v829
    %vm836 = vmor %vm834, %vm835
    %v837 = vsel %vm836, %v829, %v833
    %v838 = vand.u32 2147483647, %v828
    %vm839 = vcmp.eq.f32.partialorder %v838, 8.507059e+37
    %v840 = vand.u32 %v828, 2147483648
    %v841 = vor.u32 1.1754944e-38, %v840
    %v842 = vsel %vm839, %v841, %v837
    %v843 = vmul.f32 %v825, %v842
    %s844 = scalar_lea.vmem %s13, 24
    %845 = vst.msk [vmem:[%s844] sm:$0xff] %vm187, %v843
    %846 = vmatpush.msra.mxu0 0.0
    %847 = vmatpush.msra.mxu0 0.0
    %848 = vmatpush.msra.mxu0 0.0
    %849 = vmatpush.msra.mxu0 0.0
    %850 = vmatpush.msra.mxu0 0.0
    %851 = vmatpush.msra.mxu0 0.0
    %852 = vmatpush.msra.mxu0 0.0
    %853 = vmatpush.msra.mxu0 0.0
    %854 = vmatpush.msra.mxu0 0.0
    %855 = vmatpush.msra.mxu0 0.0
    %856 = vmatpush.msra.mxu0 0.0
    %857 = vmatpush.msra.mxu0 0.0
    %858 = vmatpush.msra.mxu0 %v68
    %859 = vmatpush.msra.mxu0 %v67
    %860 = vmatpush.msra.mxu0 %v66
    %861 = vmatpush.msra.mxu0 %v65
    %862 = vmatmul.f32.gmra.mxu0 %v745
    %v863 = vpop.f32.mrf.mxu0
    %v864 = vadd.f32 0.0, %v863
    %865 = vdwg.mxu0
    %v867 = vsel %vm187, %v843, 0
    %869 = vmatpush.msra.mxu0 0.0
    %870 = vmatpush.msra.mxu0 0.0
    %871 = vmatpush.msra.mxu0 0.0
    %872 = vmatpush.msra.mxu0 0.0
    %873 = vmatpush.msra.mxu0 0.0
    %874 = vmatpush.msra.mxu0 0.0
    %875 = vmatpush.msra.mxu0 0.0
    %876 = vmatpush.msra.mxu0 0.0
    %877 = vmatpush.msra.mxu0 0.0
    %878 = vmatpush.msra.mxu0 0.0
    %879 = vmatpush.msra.mxu0 0.0
    %880 = vmatpush.msra.mxu0 0.0
    %881 = vmatpush.msra.mxu0 0.0
    %882 = vmatpush.msra.mxu0 0.0
    %883 = vmatpush.msra.mxu0 %v64
    %884 = vmatpush.msra.mxu0 %v63
    %885 = vmatmul.f32.gmra.mxu0 %v867
    %v886 = vpop.f32.mrf.mxu0
    %v887 = vadd.f32 %v864, %v886
    %888 = vdwg.mxu0
    %v889 = vadd.f32 %v887, %v69
    %v890 = vxor.u32 %v889, 2147483648
    %v891 = vmul.f32 %v890, 1.442695
    %v892 = vpow.pop %v891
    %v893 = vadd.f32 %v892, 1.0
    %v894 = vrcp.pop %v893
    %v895 = vmul.f32 %v893, %v894
    %v896 = vsub.f32 1.0, %v895
    %v897 = vmul.f32 %v894, %v896
    %v898 = vadd.f32 %v894, %v897
    %vm899 = vweird.f32 %v893
    %vm900 = vweird.f32 %v894
    %vm901 = vmor %vm899, %vm900
    %v902 = vsel %vm901, %v894, %v898
    %v903 = vand.u32 2147483647, %v893
    %vm904 = vcmp.eq.f32.partialorder %v903, 8.507059e+37
    %v905 = vand.u32 %v893, 2147483648
    %v906 = vor.u32 1.1754944e-38, %v905
    %v907 = vsel %vm904, %v906, %v902
    %v908 = vmul.f32 1.0, %v907
    %v909 = vtanh.pop %v889
    %v910 = vmul.f32 %v908, %v710
    %912 = vrot.lane.b32.xlu0 %v909, 64
    %v913 = vpop.permute.xlu0 %912
    %v915 = vmul.f32 %v908, %v913
    %917 = vrot.lane.b32.xlu0 %v915, 32
    %v918 = vpop.permute.xlu0 %917
    %v920 = vadd.f32 %v910, %v918
    %v921 = vtanh.pop %v920
    %923 = vrot.lane.b32.xlu0 %v921, 64
    %v924 = vpop.permute.xlu0 %923
    %v926 = vmul.f32 %v908, %v924
    %928 = vrot.lane.b32.xlu0 %v920, 96
    %v929 = vpop.permute.xlu0 %928
    %v930 = vsel %vm88, %v929, 0
    %932 = vmatpush.msra.mxu0 0.0
    %933 = vmatpush.msra.mxu0 0.0
    %934 = vmatpush.msra.mxu0 0.0
    %935 = vmatpush.msra.mxu0 0.0
    %936 = vmatpush.msra.mxu0 0.0
    %937 = vmatpush.msra.mxu0 0.0
    %938 = vmatpush.msra.mxu0 0.0
    %939 = vmatpush.msra.mxu0 0.0
    %940 = vmatpush.msra.mxu0 0.0
    %941 = vmatpush.msra.mxu0 0.0
    %942 = vmatpush.msra.mxu0 0.0
    %943 = vmatpush.msra.mxu0 0.0
    %944 = vmatpush.msra.mxu0 %v77
    %945 = vmatpush.msra.mxu0 %v76
    %946 = vmatpush.msra.mxu0 %v75
    %947 = vmatpush.msra.mxu0 %v74
    %948 = vmatmul.f32.gmra.mxu0 %v930
    %v949 = vpop.f32.mrf.mxu0
    %v950 = vadd.f32 0.0, %v949
    %951 = vdwg.mxu0
    %953 = vrot.lane.b32.xlu0 %v926, 32
    %v954 = vpop.permute.xlu0 %953
    %v955 = vsel %vm88, %v954, 0
    %957 = vmatpush.msra.mxu0 0.0
    %958 = vmatpush.msra.mxu0 0.0
    %959 = vmatpush.msra.mxu0 0.0
    %960 = vmatpush.msra.mxu0 0.0
    %961 = vmatpush.msra.mxu0 0.0
    %962 = vmatpush.msra.mxu0 0.0
    %963 = vmatpush.msra.mxu0 0.0
    %964 = vmatpush.msra.mxu0 0.0
    %965 = vmatpush.msra.mxu0 0.0
    %966 = vmatpush.msra.mxu0 0.0
    %967 = vmatpush.msra.mxu0 0.0
    %968 = vmatpush.msra.mxu0 0.0
    %969 = vmatpush.msra.mxu0 %v73
    %970 = vmatpush.msra.mxu0 %v72
    %971 = vmatpush.msra.mxu0 %v71
    %972 = vmatpush.msra.mxu0 %v70
    %973 = vmatmul.f32.gmra.mxu0 %v955
    %v974 = vpop.f32.mrf.mxu0
    %v975 = vadd.f32 %v950, %v974
    %976 = vdwg.mxu0
    %v977 = vadd.f32 %v975, %v62
    %v978 = vmax.f32 %v977, 0.0
    %v980 = vsel %vm88, %v978, 0
    %982 = vmatpush.msra.mxu0 0.0
    %983 = vmatpush.msra.mxu0 0.0
    %984 = vmatpush.msra.mxu0 0.0
    %985 = vmatpush.msra.mxu0 0.0
    %986 = vmatpush.msra.mxu0 0.0
    %987 = vmatpush.msra.mxu0 0.0
    %988 = vmatpush.msra.mxu0 0.0
    %989 = vmatpush.msra.mxu0 0.0
    %990 = vmatpush.msra.mxu0 0.0
    %991 = vmatpush.msra.mxu0 0.0
    %992 = vmatpush.msra.mxu0 0.0
    %993 = vmatpush.msra.mxu0 0.0
    %994 = vmatpush.msra.mxu0 %v81
    %995 = vmatpush.msra.mxu0 %v80
    %996 = vmatpush.msra.mxu0 %v79
    %997 = vmatpush.msra.mxu0 %v78
    %998 = vmatmul.f32.gmra.mxu0 %v980
    %v999 = vpop.f32.mrf.mxu0
    %v1000 = vadd.f32 %v82, %v999
    %1001 = vdwg.mxu0
    %v1002 = vmax.f32 %v1000, 0.0
    %v1004 = vsel %vm88, %v1002, 0
    %1006 = vmatpush.msra.mxu0 0.0
    %1007 = vmatpush.msra.mxu0 0.0
    %1008 = vmatpush.msra.mxu0 0.0
    %1009 = vmatpush.msra.mxu0 0.0
    %1010 = vmatpush.msra.mxu0 0.0
    %1011 = vmatpush.msra.mxu0 0.0
    %1012 = vmatpush.msra.mxu0 0.0
    %1013 = vmatpush.msra.mxu0 0.0
    %1014 = vmatpush.msra.mxu0 0.0
    %1015 = vmatpush.msra.mxu0 0.0
    %1016 = vmatpush.msra.mxu0 0.0
    %1017 = vmatpush.msra.mxu0 0.0
    %1018 = vmatpush.msra.mxu0 %v86
    %1019 = vmatpush.msra.mxu0 %v85
    %1020 = vmatpush.msra.mxu0 %v84
    %1021 = vmatpush.msra.mxu0 %v83
    %1022 = vmatmul.f32.gmra.mxu0 %v1004
    %v1023 = vpop.f32.mrf.mxu0
    %v1024 = vadd.f32 %v87, %v1023
    %1025 = vdwg.mxu0
    %s1026 = scalar_lea.vmem %s3, 32
    %v1027 = vld [vmem:[%s1026] sm:$0xff]
    %v1028 = vadd.f32 %v1024, %v1027
    %v1029 = vmul.f32 %v1028, 5.0
    %v1030 = vsel %vm187, %v1029, -inf
    %1031 = vmax.xlane.f32.xlu0 %v1030
    %v1032 = vpop.xlane.xlu0 %1031
    %v1033 = vsub.f32 %v1029, %v1032
    %v1034 = vmul.f32 %v1033, 1.442695
    %v1035 = vpow.pop %v1034
    %v1036 = vsel %vm187, %v1035, 0.0
    %1037 = vadd.xlane.f32.xlu0 %v1036
    %v1038 = vpop.xlane.xlu0 %1037
    %v1039 = vrcp.pop %v1038
    %v1040 = vmul.f32 %v1038, %v1039
    %v1041 = vsub.f32 1.0, %v1040
    %v1042 = vmul.f32 %v1039, %v1041
    %v1043 = vadd.f32 %v1039, %v1042
    %vm1044 = vweird.f32 %v1038
    %vm1045 = vweird.f32 %v1039
    %vm1046 = vmor %vm1044, %vm1045
    %v1047 = vsel %vm1046, %v1039, %v1043
    %v1048 = vand.u32 2147483647, %v1038
    %vm1049 = vcmp.eq.f32.partialorder %v1048, 8.507059e+37
    %v1050 = vand.u32 %v1038, 2147483648
    %v1051 = vor.u32 1.1754944e-38, %v1050
    %v1052 = vsel %vm1049, %v1051, %v1047
    %v1053 = vmul.f32 %v1035, %v1052
    %s1054 = scalar_lea.vmem %s13, 32
    %1055 = vst.msk [vmem:[%s1054] sm:$0xff] %vm187, %v1053
    %1056 = vmatpush.msra.mxu0 0.0
    %1057 = vmatpush.msra.mxu0 0.0
    %1058 = vmatpush.msra.mxu0 0.0
    %1059 = vmatpush.msra.mxu0 0.0
    %1060 = vmatpush.msra.mxu0 0.0
    %1061 = vmatpush.msra.mxu0 0.0
    %1062 = vmatpush.msra.mxu0 0.0
    %1063 = vmatpush.msra.mxu0 0.0
    %1064 = vmatpush.msra.mxu0 0.0
    %1065 = vmatpush.msra.mxu0 0.0
    %1066 = vmatpush.msra.mxu0 0.0
    %1067 = vmatpush.msra.mxu0 0.0
    %1068 = vmatpush.msra.mxu0 %v68
    %1069 = vmatpush.msra.mxu0 %v67
    %1070 = vmatpush.msra.mxu0 %v66
    %1071 = vmatpush.msra.mxu0 %v65
    %1072 = vmatmul.f32.gmra.mxu0 %v955
    %v1073 = vpop.f32.mrf.mxu0
    %v1074 = vadd.f32 0.0, %v1073
    %1075 = vdwg.mxu0
    %v1077 = vsel %vm187, %v1053, 0
    %1079 = vmatpush.msra.mxu0 0.0
    %1080 = vmatpush.msra.mxu0 0.0
    %1081 = vmatpush.msra.mxu0 0.0
    %1082 = vmatpush.msra.mxu0 0.0
    %1083 = vmatpush.msra.mxu0 0.0
    %1084 = vmatpush.msra.mxu0 0.0
    %1085 = vmatpush.msra.mxu0 0.0
    %1086 = vmatpush.msra.mxu0 0.0
    %1087 = vmatpush.msra.mxu0 0.0
    %1088 = vmatpush.msra.mxu0 0.0
    %1089 = vmatpush.msra.mxu0 0.0
    %1090 = vmatpush.msra.mxu0 0.0
    %1091 = vmatpush.msra.mxu0 0.0
    %1092 = vmatpush.msra.mxu0 0.0
    %1093 = vmatpush.msra.mxu0 %v64
    %1094 = vmatpush.msra.mxu0 %v63
    %1095 = vmatmul.f32.gmra.mxu0 %v1077
    %v1096 = vpop.f32.mrf.mxu0
    %v1097 = vadd.f32 %v1074, %v1096
    %1098 = vdwg.mxu0
    %v1099 = vadd.f32 %v1097, %v69
    %v1100 = vxor.u32 %v1099, 2147483648
    %v1101 = vmul.f32 %v1100, 1.442695
    %v1102 = vpow.pop %v1101
    %v1103 = vadd.f32 %v1102, 1.0
    %v1104 = vrcp.pop %v1103
    %v1105 = vmul.f32 %v1103, %v1104
    %v1106 = vsub.f32 1.0, %v1105
    %v1107 = vmul.f32 %v1104, %v1106
    %v1108 = vadd.f32 %v1104, %v1107
    %vm1109 = vweird.f32 %v1103
    %vm1110 = vweird.f32 %v1104
    %vm1111 = vmor %vm1109, %vm1110
    %v1112 = vsel %vm1111, %v1104, %v1108
    %v1113 = vand.u32 2147483647, %v1103
    %vm1114 = vcmp.eq.f32.partialorder %v1113, 8.507059e+37
    %v1115 = vand.u32 %v1103, 2147483648
    %v1116 = vor.u32 1.1754944e-38, %v1115
    %v1117 = vsel %vm1114, %v1116, %v1112
    %v1118 = vmul.f32 1.0, %v1117
    %v1119 = vtanh.pop %v1099
    %v1120 = vmul.f32 %v1118, %v920
    %1122 = vrot.lane.b32.xlu0 %v1119, 64
    %v1123 = vpop.permute.xlu0 %1122
    %v1125 = vmul.f32 %v1118, %v1123
    %1127 = vrot.lane.b32.xlu0 %v1125, 32
    %v1128 = vpop.permute.xlu0 %1127
    %v1130 = vadd.f32 %v1120, %v1128
    %v1131 = vtanh.pop %v1130
    %1133 = vrot.lane.b32.xlu0 %v1131, 64
    %v1134 = vpop.permute.xlu0 %1133
    %v1136 = vmul.f32 %v1118, %v1134
    %1138 = vrot.lane.b32.xlu0 %v1130, 96
    %v1139 = vpop.permute.xlu0 %1138
    %v1140 = vsel %vm88, %v1139, 0
    %1142 = vmatpush.msra.mxu0 0.0
    %1143 = vmatpush.msra.mxu0 0.0
    %1144 = vmatpush.msra.mxu0 0.0
    %1145 = vmatpush.msra.mxu0 0.0
    %1146 = vmatpush.msra.mxu0 0.0
    %1147 = vmatpush.msra.mxu0 0.0
    %1148 = vmatpush.msra.mxu0 0.0
    %1149 = vmatpush.msra.mxu0 0.0
    %1150 = vmatpush.msra.mxu0 0.0
    %1151 = vmatpush.msra.mxu0 0.0
    %1152 = vmatpush.msra.mxu0 0.0
    %1153 = vmatpush.msra.mxu0 0.0
    %1154 = vmatpush.msra.mxu0 %v77
    %1155 = vmatpush.msra.mxu0 %v76
    %1156 = vmatpush.msra.mxu0 %v75
    %1157 = vmatpush.msra.mxu0 %v74
    %1158 = vmatmul.f32.gmra.mxu0 %v1140
    %v1159 = vpop.f32.mrf.mxu0
    %v1160 = vadd.f32 0.0, %v1159
    %1161 = vdwg.mxu0
    %1163 = vrot.lane.b32.xlu0 %v1136, 32
    %v1164 = vpop.permute.xlu0 %1163
    %v1165 = vsel %vm88, %v1164, 0
    %1167 = vmatpush.msra.mxu0 0.0
    %1168 = vmatpush.msra.mxu0 0.0
    %1169 = vmatpush.msra.mxu0 0.0
    %1170 = vmatpush.msra.mxu0 0.0
    %1171 = vmatpush.msra.mxu0 0.0
    %1172 = vmatpush.msra.mxu0 0.0
    %1173 = vmatpush.msra.mxu0 0.0
    %1174 = vmatpush.msra.mxu0 0.0
    %1175 = vmatpush.msra.mxu0 0.0
    %1176 = vmatpush.msra.mxu0 0.0
    %1177 = vmatpush.msra.mxu0 0.0
    %1178 = vmatpush.msra.mxu0 0.0
    %1179 = vmatpush.msra.mxu0 %v73
    %1180 = vmatpush.msra.mxu0 %v72
    %1181 = vmatpush.msra.mxu0 %v71
    %1182 = vmatpush.msra.mxu0 %v70
    %1183 = vmatmul.f32.gmra.mxu0 %v1165
    %v1184 = vpop.f32.mrf.mxu0
    %v1185 = vadd.f32 %v1160, %v1184
    %1186 = vdwg.mxu0
    %v1187 = vadd.f32 %v1185, %v62
    %v1188 = vmax.f32 %v1187, 0.0
    %v1190 = vsel %vm88, %v1188, 0
    %1192 = vmatpush.msra.mxu0 0.0
    %1193 = vmatpush.msra.mxu0 0.0
    %1194 = vmatpush.msra.mxu0 0.0
    %1195 = vmatpush.msra.mxu0 0.0
    %1196 = vmatpush.msra.mxu0 0.0
    %1197 = vmatpush.msra.mxu0 0.0
    %1198 = vmatpush.msra.mxu0 0.0
    %1199 = vmatpush.msra.mxu0 0.0
    %1200 = vmatpush.msra.mxu0 0.0
    %1201 = vmatpush.msra.mxu0 0.0
    %1202 = vmatpush.msra.mxu0 0.0
    %1203 = vmatpush.msra.mxu0 0.0
    %1204 = vmatpush.msra.mxu0 %v81
    %1205 = vmatpush.msra.mxu0 %v80
    %1206 = vmatpush.msra.mxu0 %v79
    %1207 = vmatpush.msra.mxu0 %v78
    %1208 = vmatmul.f32.gmra.mxu0 %v1190
    %v1209 = vpop.f32.mrf.mxu0
    %v1210 = vadd.f32 %v82, %v1209
    %1211 = vdwg.mxu0
    %v1212 = vmax.f32 %v1210, 0.0
    %v1214 = vsel %vm88, %v1212, 0
    %1216 = vmatpush.msra.mxu0 0.0
    %1217 = vmatpush.msra.mxu0 0.0
    %1218 = vmatpush.msra.mxu0 0.0
    %1219 = vmatpush.msra.mxu0 0.0
    %1220 = vmatpush.msra.mxu0 0.0
    %1221 = vmatpush.msra.mxu0 0.0
    %1222 = vmatpush.msra.mxu0 0.0
    %1223 = vmatpush.msra.mxu0 0.0
    %1224 = vmatpush.msra.mxu0 0.0
    %1225 = vmatpush.msra.mxu0 0.0
    %1226 = vmatpush.msra.mxu0 0.0
    %1227 = vmatpush.msra.mxu0 0.0
    %1228 = vmatpush.msra.mxu0 %v86
    %1229 = vmatpush.msra.mxu0 %v85
    %1230 = vmatpush.msra.mxu0 %v84
    %1231 = vmatpush.msra.mxu0 %v83
    %1232 = vmatmul.f32.gmra.mxu0 %v1214
    %v1233 = vpop.f32.mrf.mxu0
    %v1234 = vadd.f32 %v87, %v1233
    %1235 = vdwg.mxu0
    %s1236 = scalar_lea.vmem %s3, 40
    %v1237 = vld [vmem:[%s1236] sm:$0xff]
    %v1238 = vadd.f32 %v1234, %v1237
    %v1239 = vmul.f32 %v1238, 5.0
    %v1240 = vsel %vm187, %v1239, -inf
    %1241 = vmax.xlane.f32.xlu0 %v1240
    %v1242 = vpop.xlane.xlu0 %1241
    %v1243 = vsub.f32 %v1239, %v1242
    %v1244 = vmul.f32 %v1243, 1.442695
    %v1245 = vpow.pop %v1244
    %v1246 = vsel %vm187, %v1245, 0.0
    %1247 = vadd.xlane.f32.xlu0 %v1246
    %v1248 = vpop.xlane.xlu0 %1247
    %v1249 = vrcp.pop %v1248
    %v1250 = vmul.f32 %v1248, %v1249
    %v1251 = vsub.f32 1.0, %v1250
    %v1252 = vmul.f32 %v1249, %v1251
    %v1253 = vadd.f32 %v1249, %v1252
    %vm1254 = vweird.f32 %v1248
    %vm1255 = vweird.f32 %v1249
    %vm1256 = vmor %vm1254, %vm1255
    %v1257 = vsel %vm1256, %v1249, %v1253
    %v1258 = vand.u32 2147483647, %v1248
    %vm1259 = vcmp.eq.f32.partialorder %v1258, 8.507059e+37
    %v1260 = vand.u32 %v1248, 2147483648
    %v1261 = vor.u32 1.1754944e-38, %v1260
    %v1262 = vsel %vm1259, %v1261, %v1257
    %v1263 = vmul.f32 %v1245, %v1262
    %s1264 = scalar_lea.vmem %s13, 40
    %1265 = vst.msk [vmem:[%s1264] sm:$0xff] %vm187, %v1263
    // Predicated region
    $region58: #{oracle_forward.1} parent=1 // pred_check
      _
    $region59: #{oracle_forward.1} parent=1 // pred_check_branch
      %1267 = sbr.rel (0) target = $region61
    $region60: #{oracle_forward.1} parent=1 // pred_region
      _
    $region61: #{oracle_forward.1} parent=1 // pred_fallthru
      _
    // Predicated region
    $region62: #{oracle_forward.1} parent=1 // pred_check
      _
    $region63: #{oracle_forward.1} parent=1 // pred_check_branch
      %1269 = sbr.rel (0) target = $region65
    $region64: #{oracle_forward.1} parent=1 // pred_region
      _
    $region65: #{oracle_forward.1} parent=1 // pred_fallthru
      _
    %1270 = vsyncpa [#allocation3], 1

</llo_original>
